<compile_context>
chip_gen: v6e
topology: v6e:2x2x1
jax: 0.10.0
libtpu: 0.0.40
codegen_flags: <defaults>
</compile_context>

<pallas_src>
import jax
import jax.numpy as jnp
import numpy as np
from jax.experimental import pallas as pl
from jax.experimental.pallas import tpu as pltpu

HIDDEN = 20
NUM_LAYERS = 3
LANE = 128


def _round_up(v, m):
    return (v + m - 1) // m * m


def _tpu_vmem_capacity_bytes():
    """Physical VMEM per TensorCore; conservative (v7x-sized) fallback."""
    try:
        return int(pltpu.get_tpu_info().vmem_capacity_bytes)
    except Exception:
        return 64 * 1024 * 1024


def _pick_row_tile(n_p, vmem_cap):
    """Largest row tile in {128, 256, 512} dividing n_p; cap at 256 on 64 MiB parts."""
    tm_cap = 512 if vmem_cap > 96 * 1024 * 1024 else 256
    tm = 128
    for cand in (256, 512):
        if cand <= tm_cap and n_p % cand == 0:
            tm = cand
    return tm


def _vmem_limit_bytes(n_p, d, c_p, tm, vmem_cap):
    need = (2 * n_p * d * 2            # ping-pong h scratch (bf16)
            + 2 * tm * n_p * 2         # double-buffered adjacency tile (bf16)
            + 2 * (d * d * 2 + d * 4)  # double-buffered per-layer W (bf16) + bias (f32)
            + 2 * 2 * d * c_p * 2      # w_max / w_mean (bf16)
            + 4 * c_p * 4              # b_lin + output block (f32)
            + 2 * d * 4)               # pooling accumulators (f32)
    headroom = 4 * 1024 * 1024         # Mosaic internal scratch / pipeline buffers
    return int(min(0.75 * vmem_cap, max(need + headroom, 16 * 1024 * 1024)))


def _make_gin_kernel(n_true, tm, num_tiles, num_layers, eps):
    inv_n = float(1.0 / n_true)
    one_plus_eps = float(1.0 + eps)

    def kernel(x_hbm, adj_ref, w_ref, b_ref, wmax_ref, wmean_ref, blin_ref,
               out_ref, h_scr, max_scr, sum_scr, seed_sem):
        l = pl.program_id(0)                     # layer index (outer, sequential)
        t = pl.program_id(1)                     # adjacency row-tile index (inner)
        row0 = pl.multiple_of(t * tm, tm)

        # Seed h^0 = x with a single HBM -> VMEM-scratch DMA (x is never VMEM-resident).
        @pl.when((l == 0) & (t == 0))
        def _seed():
            cp = pltpu.make_async_copy(x_hbm, h_scr.at[0], seed_sem)
            cp.start()
            cp.wait()

        # Pooling accumulator init. 0 is a valid max identity ONLY because the final
        # layer is post-ReLU (h >= 0).
        @pl.when((l == num_layers - 1) & (t == 0))
        def _init_pool():
            max_scr[...] = jnp.zeros_like(max_scr)
            sum_scr[...] = jnp.zeros_like(sum_scr)

        src = jax.lax.rem(l, 2)                  # slot holding h^{l-1} (x for l == 0)
        dst = 1 - src

        # Neighborhood aggregation: native bf16 MXU operands, f32 accumulation.
        agg = jnp.dot(adj_ref[...], h_scr[src],
                      preferred_element_type=jnp.float32)
        # Exact GIN self-term in f32 (adjacency stays pure 0/1 regardless of eps).
        h_self = h_scr[src, pl.ds(row0, tm), :].astype(jnp.float32)
        agg = agg + one_plus_eps * h_self

        # Per-layer Linear + ReLU; elementwise math in f32, bf16 only at the MXU.
        h_new = jnp.dot(agg.astype(jnp.bfloat16), w_ref[0],
                        preferred_element_type=jnp.float32) + b_ref[0]
        h_new = jnp.maximum(h_new, 0.0)          # (tm, d), f32, lane-dense

        # Single dynamic-slot store of this row tile of h^{l} (bf16 storage format).
        h_scr[dst, pl.ds(row0, tm), :] = h_new.astype(h_scr.dtype)

        # Accumulate global max / sum pooling on the final-layer embeddings (f32).
        @pl.when(l == num_layers - 1)
        def _pool():
            rows = row0 + jax.lax.broadcasted_iota(jnp.int32, (tm, 1), 0)
            hv = jnp.where(rows < n_true, h_new, 0.0)       # mask padded rows
            max_scr[...] = jnp.maximum(max_scr[...],
                                       jnp.max(hv, axis=0, keepdims=True))
            sum_scr[...] = sum_scr[...] + jnp.sum(hv, axis=0, keepdims=True)

        # Finalize: lin(concat([max_pool, mean_pool])) as two lane-dense matmuls.
        @pl.when((l == num_layers - 1) & (t == num_tiles - 1))
        def _finalize():
            out = (jnp.dot(max_scr[...].astype(jnp.bfloat16), wmax_ref[...],
                           preferred_element_type=jnp.float32)
                   + jnp.dot((sum_scr[...] * inv_n).astype(jnp.bfloat16),
                             wmean_ref[...], preferred_element_type=jnp.float32)
                   + blin_ref[...])
            out_ref[...] = out.astype(out_ref.dtype)

    return kernel


def graph_gin_forward(x, adj, params, eps=0.0):
    """x: (N, F) f32 node features; adj: (N, N) 0/1, adj[i, j] = 1 iff edge j -> i."""
    w1, b1, w2, b2, w3, b3, wlin, blin = params
    n, f = x.shape
    hid = w1.shape[1]
    c = wlin.shape[1]
    f32, bf16 = jnp.float32, jnp.bfloat16

    d = _round_up(max(f, hid), LANE)            # shared lane-padded feature/hidden width
    c_p = _round_up(c, LANE)
    n_p = _round_up(n, LANE)                    # padding decoupled from the row tile
    vmem_cap = _tpu_vmem_capacity_bytes()
    tm = _pick_row_tile(n_p, vmem_cap)
    num_tiles = n_p // tm

    def pad2(a, rows, cols, dtype):
        a = jnp.asarray(a, f32)
        if a.ndim == 1:
            a = a.reshape(1, -1)
        a = jnp.pad(a, ((0, rows - a.shape[0]), (0, cols - a.shape[1])))
        return a.astype(dtype)

    adj_p = pad2(adj, n_p, n_p, bf16)           # pure 0/1: exact in bf16
    x_p = pad2(x, n_p, d, bf16)                 # DMA'd once into the bf16 h scratch
    w_stack = jnp.stack([pad2(w1, d, d, bf16), pad2(w2, d, d, bf16),
                         pad2(w3, d, d, bf16)])                          # (3, d, d)
    b_stack = jnp.stack([pad2(b1, 1, d, f32), pad2(b2, 1, d, f32),
                         pad2(b3, 1, d, f32)])                           # (3, 1, d)
    wmax_p = pad2(wlin[:hid], d, c_p, bf16)     # split outside the kernel
    wmean_p = pad2(wlin[hid:], d, c_p, bf16)
    blin_p = pad2(blin, 1, c_p, f32)

    kernel = _make_gin_kernel(n, tm, num_tiles, NUM_LAYERS, eps)

    grid_spec = pltpu.PrefetchScalarGridSpec(
        num_scalar_prefetch=0,
        grid=(NUM_LAYERS, num_tiles),
        in_specs=[
            pl.BlockSpec(memory_space=pl.ANY),                 # x (HBM; manual DMA once)
            pl.BlockSpec((tm, n_p), lambda l, t: (t, 0)),      # adjacency row tile (bf16)
            pl.BlockSpec((1, d, d), lambda l, t: (l, 0, 0)),   # per-layer weight (bf16)
            pl.BlockSpec((1, 1, d), lambda l, t: (l, 0, 0)),   # per-layer bias (f32)
            pl.BlockSpec((d, c_p), lambda l, t: (0, 0)),       # w_max (bf16, resident)
            pl.BlockSpec((d, c_p), lambda l, t: (0, 0)),       # w_mean (bf16, resident)
            pl.BlockSpec((1, c_p), lambda l, t: (0, 0)),       # b_lin (f32)
        ],
        out_specs=pl.BlockSpec((1, c_p), lambda l, t: (0, 0)),
        scratch_shapes=[
            pltpu.VMEM((2, n_p, d), bf16),      # ping-pong node embeddings (resident)
            pltpu.VMEM((1, d), f32),            # running max pool
            pltpu.VMEM((1, d), f32),            # running sum pool
            pltpu.SemaphoreType.DMA(()),        # x -> h_scr[0] seed DMA
        ],
    )

    out_p = pl.pallas_call(
        kernel,
        out_shape=jax.ShapeDtypeStruct((1, c_p), f32),
        grid_spec=grid_spec,
        compiler_params=pltpu.CompilerParams(
            # Sequential dependency across layers + pooling reduction across tiles.
            dimension_semantics=("arbitrary", "arbitrary"),
            vmem_limit_bytes=_vmem_limit_bytes(n_p, d, c_p, tm, vmem_cap),
        ),
    )(x_p, adj_p, w_stack, b_stack, wmax_p, wmean_p, blin_p)
    return out_p[:, :c]


def init_params(key, num_feats, num_classes, hidden=HIDDEN):
    ks = jax.random.split(key, 8)

    def lin(kw, kb, fin, fout):
        bound = 1.0 / np.sqrt(fin)
        w = jax.random.uniform(kw, (fin, fout), jnp.float32, -bound, bound)
        b = jax.random.uniform(kb, (1, fout), jnp.float32, -bound, bound)
        return w, b

    w1, b1 = lin(ks[0], ks[1], num_feats, hidden)
    w2, b2 = lin(ks[2], ks[3], hidden, hidden)
    w3, b3 = lin(ks[4], ks[5], hidden, hidden)
    wlin, blin = lin(ks[6], ks[7], 2 * hidden, num_classes)
    return (w1, b1, w2, b2, w3, b3, wlin, blin)


def reference_forward_np(x, adj, params, eps=0.0):
    x = np.asarray(x, np.float64)
    adj = np.asarray(adj, np.float64)
    w1, b1, w2, b2, w3, b3, wlin, blin = [np.asarray(p, np.float64) for p in params]
    h = np.maximum(((1.0 + eps) * x + adj @ x) @ w1 + b1, 0.0)
    h = np.maximum(((1.0 + eps) * h + adj @ h) @ w2 + b2, 0.0)
    h = np.maximum(((1.0 + eps) * h + adj @ h) @ w3 + b3, 0.0)
    pooled = np.concatenate([h.max(axis=0, keepdims=True),
                             h.mean(axis=0, keepdims=True)], axis=-1)
    return pooled @ wlin + blin


def build_ring_graph(n, chords):
    src = list(range(n)) + [a for a, _ in chords]
    dst = [(i + 1) % n for i in range(n)] + [b for _, b in chords]
    srcs = jnp.array(src + dst, dtype=jnp.int32)   # make undirected
    dsts = jnp.array(dst + src, dtype=jnp.int32)
    # adj[i, j] = 1 iff edge j -> i (message from source j aggregated at target i)
    return jnp.zeros((n, n), jnp.float32).at[dsts, srcs].set(1.0)


if __name__ == "__main__":
    key = jax.random.PRNGKey(0)
    num_feats, num_classes = 10, 2
    k_x, k_p = jax.random.split(key)
    params = init_params(k_p, num_feats, num_classes)

    # Case 1: N=16; case 2: N=13 (exercises row padding + pool masking).
    cases = [
        (16, [(0, 8), (3, 12), (5, 13), (9, 2)]),
        (13, [(0, 6), (3, 9), (5, 11)]),
    ]
    for num_nodes, chords in cases:
        x = jax.random.normal(jax.random.fold_in(k_x, num_nodes),
                              (num_nodes, num_feats), jnp.float32)
        adj = build_ring_graph(num_nodes, chords)

        out = graph_gin_forward(x, adj, params)
        out = jax.block_until_ready(out)

        ref = reference_forward_np(x, adj, params)
        assert out.shape == (1, num_classes), out.shape
        # bf16 storage / MXU-operand path vs float64 reference.
        assert np.allclose(np.asarray(out, np.float64), ref, atol=5e-2, rtol=5e-2), \
            (num_nodes, np.asarray(out), ref)

    print("KERNEL_OK")
</pallas_src>

<mosaic_0001>
module attributes {stable_mosaic.version = 11 : i64} {
  func.func @kernel(%arg0: i32, %arg1: i32, %arg2: memref<128x128xbf16, #tpu.memory_space<any>>, %arg3: memref<128x128xbf16, #tpu.memory_space<vmem>>, %arg4: memref<1x128x128xbf16, #tpu.memory_space<vmem>>, %arg5: memref<1x1x128xf32, #tpu.memory_space<vmem>>, %arg6: memref<128x128xbf16, #tpu.memory_space<vmem>>, %arg7: memref<128x128xbf16, #tpu.memory_space<vmem>>, %arg8: memref<1x128xf32, #tpu.memory_space<vmem>>, %arg9: memref<1x128xf32, #tpu.memory_space<vmem>>, %arg10: memref<2x128x128xbf16, #tpu.memory_space<vmem>>, %arg11: memref<1x128xf32, #tpu.memory_space<vmem>>, %arg12: memref<1x128xf32, #tpu.memory_space<vmem>>, %arg13: memref<!tpu.dma_semaphore, #tpu.memory_space<semaphore_mem>>) attributes {dimension_semantics = [#tpu.dimension_semantics<arbitrary>, #tpu.dimension_semantics<arbitrary>], iteration_bounds = array<i64: 3, 1>, scalar_prefetch = 0 : i64, scratch_operands = 4 : i64, tpu.core_type = #tpu.core_type<tc>, window_params = [{}, {transform_indices = @transform_1, window_bounds = array<i64: 128, 128>}, {transform_indices = @transform_2, window_bounds = array<i64: 1, 128, 128>}, {transform_indices = @transform_3, window_bounds = array<i64: 1, 1, 128>}, {pipeline_mode = #tpu.pipeline_mode<synchronous>, transform_indices = @transform_4, window_bounds = array<i64: 128, 128>}, {pipeline_mode = #tpu.pipeline_mode<synchronous>, transform_indices = @transform_5, window_bounds = array<i64: 128, 128>}, {pipeline_mode = #tpu.pipeline_mode<synchronous>, transform_indices = @transform_6, window_bounds = array<i64: 1, 128>}, {pipeline_mode = #tpu.pipeline_mode<synchronous>, transform_indices = @transform_7, window_bounds = array<i64: 1, 128>}]} {
    %c128_i32 = arith.constant 128 : i32
    %0 = arith.muli %arg1, %c128_i32 : i32
    %1 = tpu.assume_multiple %0, 128 : i32
    %c0_i32 = arith.constant 0 : i32
    %2 = arith.cmpi eq, %arg0, %c0_i32 : i32
    %c0_i32_0 = arith.constant 0 : i32
    %3 = arith.cmpi eq, %arg1, %c0_i32_0 : i32
    %4 = arith.andi %2, %3 : i1
    %5 = arith.extui %4 : i1 to i32
    %c0_i32_1 = arith.constant 0 : i32
    %6 = arith.cmpi ne, %5, %c0_i32_1 : i32
    scf.if %6 {
      %c0_i32_24 = arith.constant 0 : i32
      %c0_i32_25 = arith.constant 0 : i32
      %c0_i32_26 = arith.constant 0 : i32
      %51 = tpu.memref_slice %arg10[%c0_i32_24, %c0_i32_25, %c0_i32_26] : memref<2x128x128xbf16, #tpu.memory_space<vmem>> -> memref<1x128x128xbf16, #tpu.memory_space<vmem>>
      %52 = tpu.memref_squeeze %51 : memref<1x128x128xbf16, #tpu.memory_space<vmem>> -> memref<128x128xbf16, #tpu.memory_space<vmem>>
      tpu.enqueue_dma source(%arg2 : memref<128x128xbf16, #tpu.memory_space<any>>) target(%52 : memref<128x128xbf16, #tpu.memory_space<vmem>>) target_semaphore(%arg13 : memref<!tpu.dma_semaphore, #tpu.memory_space<semaphore_mem>>)
      %c0_i32_27 = arith.constant 0 : i32
      %c0_i32_28 = arith.constant 0 : i32
      %c0_i32_29 = arith.constant 0 : i32
      %53 = tpu.memref_slice %arg10[%c0_i32_27, %c0_i32_28, %c0_i32_29] : memref<2x128x128xbf16, #tpu.memory_space<vmem>> -> memref<1x128x128xbf16, #tpu.memory_space<vmem>>
      %54 = tpu.memref_squeeze %53 : memref<1x128x128xbf16, #tpu.memory_space<vmem>> -> memref<128x128xbf16, #tpu.memory_space<vmem>>
      tpu.wait_dma2 semaphore(%arg13 : memref<!tpu.dma_semaphore, #tpu.memory_space<semaphore_mem>>) src(%arg2 : memref<128x128xbf16, #tpu.memory_space<any>>) dst(%54 : memref<128x128xbf16, #tpu.memory_space<vmem>>)
    } else {
    }
    %c2_i32 = arith.constant 2 : i32
    %7 = arith.cmpi eq, %arg0, %c2_i32 : i32
    %c0_i32_2 = arith.constant 0 : i32
    %8 = arith.cmpi eq, %arg1, %c0_i32_2 : i32
    %9 = arith.andi %7, %8 : i1
    %10 = arith.extui %9 : i1 to i32
    %c0_i32_3 = arith.constant 0 : i32
    %11 = arith.cmpi ne, %10, %c0_i32_3 : i32
    scf.if %11 {
      %cst_24 = arith.constant 0.000000e+00 : f32
      %51 = vector.broadcast %cst_24 : f32 to vector<1x128xf32>
      %c0_25 = arith.constant 0 : index
      %c0_26 = arith.constant 0 : index
      %52 = vector.load %arg11[%c0_25, %c0_26] : memref<1x128xf32, #tpu.memory_space<vmem>>, vector<1x128xf32>
      tpu.vector_store %arg11[%c0_25, %c0_26], %51 {strides = array<i32>} : memref<1x128xf32, #tpu.memory_space<vmem>>, vector<1x128xf32>,
      %cst_27 = arith.constant 0.000000e+00 : f32
      %53 = vector.broadcast %cst_27 : f32 to vector<1x128xf32>
      %c0_28 = arith.constant 0 : index
      %c0_29 = arith.constant 0 : index
      %54 = vector.load %arg12[%c0_28, %c0_29] : memref<1x128xf32, #tpu.memory_space<vmem>>, vector<1x128xf32>
      tpu.vector_store %arg12[%c0_28, %c0_29], %53 {strides = array<i32>} : memref<1x128xf32, #tpu.memory_space<vmem>>, vector<1x128xf32>,
    } else {
    }
    %c2_i32_4 = arith.constant 2 : i32
    %12 = arith.remsi %arg0, %c2_i32_4 : i32
    %c1_i32 = arith.constant 1 : i32
    %13 = arith.subi %c1_i32, %12 : i32
    %c0 = arith.constant 0 : index
    %c0_5 = arith.constant 0 : index
    %14 = vector.load %arg3[%c0, %c0_5] : memref<128x128xbf16, #tpu.memory_space<vmem>>, vector<128x128xbf16>
    %15 = arith.index_cast %12 : i32 to index
    %c0_6 = arith.constant 0 : index
    %c0_7 = arith.constant 0 : index
    %16 = vector.load %arg10[%15, %c0_6, %c0_7] : memref<2x128x128xbf16, #tpu.memory_space<vmem>>, vector<1x128x128xbf16>
    %17 = vector.shape_cast %16 : vector<1x128x128xbf16> to vector<128x128xbf16>
    %cst = arith.constant dense<0.000000e+00> : vector<128x128xf32>
    %18 = tpu.matmul %14, %17, %cst {dimension_numbers = #tpu.dot_dimension_numbers<[1], [0], [0], [1], [0, 0, 1, 1], [], []>} : vector<128x128xbf16>, vector<128x128xbf16>, vector<128x128xf32> -> vector<128x128xf32>
    %19 = arith.index_cast %12 : i32 to index
    %20 = arith.index_cast %1 : i32 to index
    %c0_8 = arith.constant 0 : index
    %21 = vector.load %arg10[%19, %20, %c0_8] : memref<2x128x128xbf16, #tpu.memory_space<vmem>>, vector<1x128x128xbf16>
    %22 = vector.shape_cast %21 : vector<1x128x128xbf16> to vector<128x128xbf16>
    %23 = arith.extf %22 : vector<128x128xbf16> to vector<128x128xf32>
    %cst_9 = arith.constant 1.000000e+00 : f32
    %24 = vector.broadcast %cst_9 : f32 to vector<128x128xf32>
    %25 = arith.mulf %24, %23 : vector<128x128xf32>
    %26 = arith.addf %18, %25 : vector<128x128xf32>
    %27 = arith.truncf %26 : vector<128x128xf32> to vector<128x128xbf16>
    %c0_10 = arith.constant 0 : index
    %c0_11 = arith.constant 0 : index
    %c0_12 = arith.constant 0 : index
    %28 = vector.load %arg4[%c0_10, %c0_11, %c0_12] : memref<1x128x128xbf16, #tpu.memory_space<vmem>>, vector<1x128x128xbf16>
    %29 = vector.shape_cast %28 : vector<1x128x128xbf16> to vector<128x128xbf16>
    %cst_13 = arith.constant dense<0.000000e+00> : vector<128x128xf32>
    %30 = tpu.matmul %27, %29, %cst_13 {dimension_numbers = #tpu.dot_dimension_numbers<[1], [0], [0], [1], [0, 0, 1, 1], [], []>} : vector<128x128xbf16>, vector<128x128xbf16>, vector<128x128xf32> -> vector<128x128xf32>
    %c0_14 = arith.constant 0 : index
    %c0_15 = arith.constant 0 : index
    %c0_16 = arith.constant 0 : index
    %31 = vector.load %arg5[%c0_14, %c0_15, %c0_16] : memref<1x1x128xf32, #tpu.memory_space<vmem>>, vector<1x1x128xf32>
    %32 = vector.shape_cast %31 : vector<1x1x128xf32> to vector<1x128xf32>
    %33 = vector.broadcast %32 : vector<1x128xf32> to vector<128x128xf32>
    %34 = arith.addf %30, %33 : vector<128x128xf32>
    %cst_17 = arith.constant 0.000000e+00 : f32
    %35 = vector.broadcast %cst_17 : f32 to vector<128x128xf32>
    %36 = arith.maximumf %34, %35 : vector<128x128xf32>
    %37 = arith.truncf %36 : vector<128x128xf32> to vector<128x128xbf16>
    %38 = arith.index_cast %13 : i32 to index
    %39 = arith.index_cast %1 : i32 to index
    %c0_18 = arith.constant 0 : index
    %40 = vector.load %arg10[%38, %39, %c0_18] : memref<2x128x128xbf16, #tpu.memory_space<vmem>>, vector<1x128x128xbf16>
    %41 = vector.shape_cast %40 : vector<1x128x128xbf16> to vector<128x128xbf16>
    %42 = vector.shape_cast %37 : vector<128x128xbf16> to vector<1x128x128xbf16>
    tpu.vector_store %arg10[%38, %39, %c0_18], %42 {strides = array<i32>} : memref<2x128x128xbf16, #tpu.memory_space<vmem>>, vector<1x128x128xbf16>,
    %c2_i32_19 = arith.constant 2 : i32
    %43 = arith.cmpi eq, %arg0, %c2_i32_19 : i32
    %44 = arith.extui %43 : i1 to i32
    %c0_i32_20 = arith.constant 0 : i32
    %45 = arith.cmpi ne, %44, %c0_i32_20 : i32
    scf.if %45 {
      %51 = tpu.iota {dimensions = array<i32: 0>} : vector<128x1xi32>
      %52 = vector.broadcast %1 : i32 to vector<128x1xi32>
      %53 = arith.addi %52, %51 : vector<128x1xi32>
      %c16_i32 = arith.constant 16 : i32
      %54 = vector.broadcast %c16_i32 : i32 to vector<128x1xi32>
      %55 = arith.cmpi slt, %53, %54 : vector<128x1xi32>
      %cst_24 = arith.constant 0.000000e+00 : f32
      %56 = vector.shape_cast %55 : vector<128x1xi1> to vector<128x1xi1>
      %57 = vector.broadcast %56 : vector<128x1xi1> to vector<128x128xi1>
      %58 = vector.broadcast %cst_24 : f32 to vector<128x128xf32>
      %59 = arith.select %57, %36, %58 : vector<128x128xi1>, vector<128x128xf32>
      %c0_25 = arith.constant 0 : index
      %c0_26 = arith.constant 0 : index
      %60 = vector.load %arg11[%c0_25, %c0_26] : memref<1x128xf32, #tpu.memory_space<vmem>>, vector<1x128xf32>
      %cst_27 = arith.constant dense<0xFF800000> : vector<128xf32>
      %61 = vector.multi_reduction <maximumf>, %59, %cst_27 [0] : vector<128x128xf32> to vector<128xf32>
      %62 = vector.shape_cast %61 : vector<128xf32> to vector<1x128xf32>
      %63 = arith.maximumf %60, %62 : vector<1x128xf32>
      %c0_28 = arith.constant 0 : index
      %c0_29 = arith.constant 0 : index
      %64 = vector.load %arg11[%c0_28, %c0_29] : memref<1x128xf32, #tpu.memory_space<vmem>>, vector<1x128xf32>
      tpu.vector_store %arg11[%c0_28, %c0_29], %63 {strides = array<i32>} : memref<1x128xf32, #tpu.memory_space<vmem>>, vector<1x128xf32>,
      %c0_30 = arith.constant 0 : index
      %c0_31 = arith.constant 0 : index
      %65 = vector.load %arg12[%c0_30, %c0_31] : memref<1x128xf32, #tpu.memory_space<vmem>>, vector<1x128xf32>
      %cst_32 = arith.constant dense<0.000000e+00> : vector<128xf32>
      %66 = vector.multi_reduction <add>, %59, %cst_32 [0] : vector<128x128xf32> to vector<128xf32>
      %67 = vector.shape_cast %66 : vector<128xf32> to vector<1x128xf32>
      %68 = arith.addf %65, %67 : vector<1x128xf32>
      %c0_33 = arith.constant 0 : index
      %c0_34 = arith.constant 0 : index
      %69 = vector.load %arg12[%c0_33, %c0_34] : memref<1x128xf32, #tpu.memory_space<vmem>>, vector<1x128xf32>
      tpu.vector_store %arg12[%c0_33, %c0_34], %68 {strides = array<i32>} : memref<1x128xf32, #tpu.memory_space<vmem>>, vector<1x128xf32>,
    } else {
    }
    %c2_i32_21 = arith.constant 2 : i32
    %46 = arith.cmpi eq, %arg0, %c2_i32_21 : i32
    %c0_i32_22 = arith.constant 0 : i32
    %47 = arith.cmpi eq, %arg1, %c0_i32_22 : i32
    %48 = arith.andi %46, %47 : i1
    %49 = arith.extui %48 : i1 to i32
    %c0_i32_23 = arith.constant 0 : i32
    %50 = arith.cmpi ne, %49, %c0_i32_23 : i32
    scf.if %50 {
      %c0_24 = arith.constant 0 : index
      %c0_25 = arith.constant 0 : index
      %51 = vector.load %arg11[%c0_24, %c0_25] : memref<1x128xf32, #tpu.memory_space<vmem>>, vector<1x128xf32>
      %52 = arith.truncf %51 : vector<1x128xf32> to vector<1x128xbf16>
      %c0_26 = arith.constant 0 : index
      %c0_27 = arith.constant 0 : index
      %53 = vector.load %arg6[%c0_26, %c0_27] : memref<128x128xbf16, #tpu.memory_space<vmem>>, vector<128x128xbf16>
      %cst_28 = arith.constant dense<0.000000e+00> : vector<1x128xf32>
      %54 = tpu.matmul %52, %53, %cst_28 {dimension_numbers = #tpu.dot_dimension_numbers<[1], [0], [0], [1], [0, 0, 1, 1], [], []>} : vector<1x128xbf16>, vector<128x128xbf16>, vector<1x128xf32> -> vector<1x128xf32>
      %c0_29 = arith.constant 0 : index
      %c0_30 = arith.constant 0 : index
      %55 = vector.load %arg12[%c0_29, %c0_30] : memref<1x128xf32, #tpu.memory_space<vmem>>, vector<1x128xf32>
      %cst_31 = arith.constant 6.250000e-02 : f32
      %56 = vector.broadcast %cst_31 : f32 to vector<1x128xf32>
      %57 = arith.mulf %55, %56 : vector<1x128xf32>
      %58 = arith.truncf %57 : vector<1x128xf32> to vector<1x128xbf16>
      %c0_32 = arith.constant 0 : index
      %c0_33 = arith.constant 0 : index
      %59 = vector.load %arg7[%c0_32, %c0_33] : memref<128x128xbf16, #tpu.memory_space<vmem>>, vector<128x128xbf16>
      %cst_34 = arith.constant dense<0.000000e+00> : vector<1x128xf32>
      %60 = tpu.matmul %58, %59, %cst_34 {dimension_numbers = #tpu.dot_dimension_numbers<[1], [0], [0], [1], [0, 0, 1, 1], [], []>} : vector<1x128xbf16>, vector<128x128xbf16>, vector<1x128xf32> -> vector<1x128xf32>
      %61 = arith.addf %54, %60 : vector<1x128xf32>
      %c0_35 = arith.constant 0 : index
      %c0_36 = arith.constant 0 : index
      %62 = vector.load %arg8[%c0_35, %c0_36] : memref<1x128xf32, #tpu.memory_space<vmem>>, vector<1x128xf32>
      %63 = arith.addf %61, %62 : vector<1x128xf32>
      %c0_37 = arith.constant 0 : index
      %c0_38 = arith.constant 0 : index
      %64 = vector.load %arg9[%c0_37, %c0_38] : memref<1x128xf32, #tpu.memory_space<vmem>>, vector<1x128xf32>
      tpu.vector_store %arg9[%c0_37, %c0_38], %63 {strides = array<i32>} : memref<1x128xf32, #tpu.memory_space<vmem>>, vector<1x128xf32>,
    } else {
    }
    return
  }
  func.func @transform_1(%arg0: i32, %arg1: i32) -> (i32, i32) {
    %c0_i32 = arith.constant 0 : i32
    %c0_i32_0 = arith.constant 0 : i32
    return %arg1, %c0_i32 : i32, i32
  }
  func.func @transform_2(%arg0: i32, %arg1: i32) -> (i32, i32, i32) {
    %c0_i32 = arith.constant 0 : i32
    %c0_i32_0 = arith.constant 0 : i32
    %c0_i32_1 = arith.constant 0 : i32
    return %arg0, %c0_i32, %c0_i32_0 : i32, i32, i32
  }
  func.func @transform_3(%arg0: i32, %arg1: i32) -> (i32, i32, i32) {
    %c0_i32 = arith.constant 0 : i32
    %c0_i32_0 = arith.constant 0 : i32
    %c0_i32_1 = arith.constant 0 : i32
    return %arg0, %c0_i32, %c0_i32_0 : i32, i32, i32
  }
  func.func @transform_4(%arg0: i32, %arg1: i32) -> (i32, i32) {
    %c0_i32 = arith.constant 0 : i32
    %c0_i32_0 = arith.constant 0 : i32
    %c0_i32_1 = arith.constant 0 : i32
    return %c0_i32, %c0_i32_0 : i32, i32
  }
  func.func @transform_5(%arg0: i32, %arg1: i32) -> (i32, i32) {
    %c0_i32 = arith.constant 0 : i32
    %c0_i32_0 = arith.constant 0 : i32
    %c0_i32_1 = arith.constant 0 : i32
    return %c0_i32, %c0_i32_0 : i32, i32
  }
  func.func @transform_6(%arg0: i32, %arg1: i32) -> (i32, i32) {
    %c0_i32 = arith.constant 0 : i32
    %c0_i32_0 = arith.constant 0 : i32
    %c0_i32_1 = arith.constant 0 : i32
    return %c0_i32, %c0_i32_0 : i32, i32
  }
  func.func @transform_7(%arg0: i32, %arg1: i32) -> (i32, i32) {
    %c0_i32 = arith.constant 0 : i32
    %c0_i32_0 = arith.constant 0 : i32
    %c0_i32_1 = arith.constant 0 : i32
    return %c0_i32, %c0_i32_0 : i32, i32
  }
}

</mosaic_0001>

<llo_original>
// kernel: tpu_custom_call.1
$region0: #{tpu_custom_call.1}
  #allocation0 [shape = 'u32[]', space=smem, size = 0x4, offset = 0x4, fixed_abs, tag = 'smem constant byte address 0x4 - core index']
  #allocation1 [shape = 'u32[144,128]{1,0:T(1,128)}', space=vmem, size = 0x12000, scoped, tag = 'internal scratch']
  #allocation2 [shape = 'bf16[2,128,128]{2,1,0:T(8,128)(2,1)}', space=vmem, size = 0x10000, scoped, tag = 'scratch operand']
  #allocation3 [shape = 'f32[1,128]{1,0:T(1,128)}', space=vmem, size = 0x200, scoped, tag = 'scratch operand']
  #allocation4 [shape = 'f32[1,128]{1,0:T(1,128)}', space=vmem, size = 0x200, scoped, tag = 'scratch operand']
  #allocation5 [shape = 's32[1]{0}', space=sflag, size = 0x4, scoped, tag = 'scratch operand']
  #allocation15 [shape = 's32[]', space=sflag, size = 0x4, offset = 0, fixed_abs, tag = 'sflag constant byte address 0x0 - dummy sync flag']
  #allocation16 [shape = 's32[]', space=sflag, size = 0x4, offset = 0, fixed_abs, tag = 'sflag constant byte address 0x0 - dummy sync flag']
  #allocation17 [shape = 'u32[]', space=smem, size = 0x4, offset = 0x44, fixed_abs, tag = 'smem constant byte address 0x44 - assertion arg 0']
  #allocation18 [shape = 'u32[]', space=smem, size = 0x4, offset = 0x48, fixed_abs, tag = 'smem constant byte address 0x48 - assertion arg 1']
  %s0 = inlined_call_operand.hbm [shape: bf16[128,128], index: 0, kind: input, shape index: {}]
  %s1 = inlined_call_operand.hbm [shape: bf16[128,128], index: 1, kind: input, shape index: {}]
  %s2 = inlined_call_operand.hbm [shape: bf16[3,128,128], index: 2, kind: input, shape index: {}]
  %s3 = inlined_call_operand.vmem [shape: f32[3,1,128], index: 3, kind: input, shape index: {}]
  %s4 = inlined_call_operand.hbm [shape: bf16[128,128], index: 4, kind: input, shape index: {}]
  %s5 = inlined_call_operand.hbm [shape: bf16[128,128], index: 5, kind: input, shape index: {}]
  %s6 = inlined_call_operand.vmem [shape: f32[1,128], index: 6, kind: input, shape index: {}]
  %s7 = inlined_call_operand.hbm [shape: f32[1,128], index: 7, kind: output, shape index: {}]
  %s8 = sld [smem:[#allocation0]]
  $region93: #{tpu_custom_call.1} parent=0
    _
  %s10 = ssub.s32 1, %s8
  %s11 = scalar_select 0, %s10, %s8
  $region1: #{tpu_custom_call.1} parent=0
    #allocation6 [shape = 'u8[32768]{0}', space=vmem, size = 0x8000, scoped, tag = 'input window, operand 1, single buffered']
    #allocation7 [shape = 's32[2]{0}', space=sflag, size = 0x8, scoped, tag = 'scoped memory for tpu_custom_call.1']
    #allocation8 [shape = 's32[2]{0}', space=sflag, size = 0x8, scoped, tag = 'scoped memory for tpu_custom_call.1']
    #allocation9 [shape = 'u8[65536]{0}', space=vmem, size = 0x10000, scoped, tag = 'input window, operand 2']
    #allocation10 [shape = 's32[2]{0}', space=sflag, size = 0x8, scoped, tag = 'scoped memory for tpu_custom_call.1']
    #allocation11 [shape = 'u8[32768]{0}', space=vmem, size = 0x8000, scoped, tag = 'input window, operand 4, single buffered']
    #allocation12 [shape = 'u8[32768]{0}', space=vmem, size = 0x8000, scoped, tag = 'input window, operand 5, single buffered']
    #allocation13 [shape = 's32[1]{0}', space=sflag, size = 0x4, scoped, tag = 'scoped memory for tpu_custom_call.1']
    #allocation14 [shape = 'u8[512]{0}', space=vmem, size = 0x400, scoped, tag = 'output window, operand 0, single buffered']
    %12 = vsyncpa [#allocation7], 0
    %13 = vsyncpa [#allocation10], 0
    %s14 = scalar_lea.sflag [#allocation10], 1
    %15 = vsyncpa %s14, 0
    %16 = vsyncpa [#allocation13], 0
    %17 = vsyncpa [#allocation8], 0
    loop: start=0, step=1, limit=5
    $region2: #{tpu_custom_call.1} parent=1 // loop_pre_header
      _
    $region3: #{tpu_custom_call.1} parent=1 // loop_header
      %s19 = sphi 0, %s23
      %p20 = scmp.ge.s32.totalorder %s19, 5
      %s26 = sphi 0, %s38
      %s27 = sphi 0, %s34
      %s28 = sphi 0, %s26
      %s29 = sphi 0, %s27
      %s30 = sphi 0, %s28
      %s31 = sphi 0, %s29
      %s41 = sphi 0, %s43
      %s44 = sphi 0, %s41
      %s45 = sphi 0, %s44
      %s61 = sphi 0, %s45
      %s67 = sphi 0, %s69
      %s70 = sphi 0, %s67
      %s71 = sphi 0, %s70
      %s87 = sphi 0, %s71
      %s93 = sphi 0, %s95
      %s96 = sphi 0, %s93
      %s97 = sphi 0, %s96
      %s113 = sphi 0, %s97
      %s117 = sphi 0, %s117
      %s119 = sphi 0, %s117
      %s120 = sphi 0, %s119
      %s134 = sphi 0, %s120
      %s138 = sphi 0, %s138
      %s140 = sphi 0, %s138
      %s141 = sphi 0, %s140
      %s155 = sphi 0, %s141
      %s159 = sphi 0, %s159
      %s161 = sphi 0, %s159
      %s162 = sphi 0, %s161
      %s176 = sphi 0, %s162
      %s180 = sphi 0, %s180
      %s182 = sphi 0, %s180
      %s183 = sphi 0, %s182
      %s197 = sphi 0, %s183
    $region4: #{tpu_custom_call.1} parent=1 // loop_header_branch
      %22 = sbr.rel (%p20) target = $region8
    $region5: #{tpu_custom_call.1} parent=1 // loop_body
      %s24 = ssub.s32 %s19, 1
      %s25 = ssub.s32 %s19, 2
      %s32 = sadd.s32 1, %s27
      %p33 = scmp.ge.s32.totalorder %s32, 1
      %s34 = scalar_select %p33, 0, %s32
      %s35 = sadd.s32 1, %s26
      %s36 = scalar_select %p33, %s35, %s26
      %p37 = scmp.ge.s32.totalorder %s36, 3
      %s38 = scalar_select %p37, 0, %s36
      %s39 = ssub.s32 %s27, %s34
      %p40 = scmp.eq.s32.totalorder %s39, 0
      %s42 = sadd.s32 %s41, 1
      %s43 = scalar_select %p40, %s41, %s42
      %p46 = pneg %p40
      %p47 = scmp.eq.s32.totalorder %s19, 2
      %p48 = por %p46, %p47
      %p49 = scmp.ne.s32.totalorder %s41, %s44
      %p50 = scmp.eq.s32.totalorder %s19, 0
      %p51 = por %p49, %p50
      %p52 = scmp.ne.s32.totalorder %s41, %s44
      %p53 = scmp.eq.s32.totalorder %s24, 2
      %p54 = por %p52, %p53
      %p55 = scmp.ne.s32.totalorder %s44, %s45
      %p56 = scmp.eq.s32.totalorder %s24, 0
      %p57 = por %p55, %p56
      %p58 = scmp.ne.s32.totalorder %s44, %s45
      %p59 = scmp.eq.s32.totalorder %s25, 2
      %p60 = por %p58, %p59
      %p62 = scmp.ne.s32.totalorder %s45, %s61
      %p63 = scmp.eq.s32.totalorder %s25, 0
      %p64 = por %p62, %p63
      %s65 = ssub.s32 %s26, %s38
      %p66 = scmp.eq.s32.totalorder %s65, 0
      %s68 = sadd.s32 %s67, 1
      %s69 = scalar_select %p66, %s67, %s68
      %p72 = pneg %p66
      %p73 = scmp.eq.s32.totalorder %s19, 2
      %p74 = por %p72, %p73
      %p75 = scmp.ne.s32.totalorder %s67, %s70
      %p76 = scmp.eq.s32.totalorder %s19, 0
      %p77 = por %p75, %p76
      %p78 = scmp.ne.s32.totalorder %s67, %s70
      %p79 = scmp.eq.s32.totalorder %s24, 2
      %p80 = por %p78, %p79
      %p81 = scmp.ne.s32.totalorder %s70, %s71
      %p82 = scmp.eq.s32.totalorder %s24, 0
      %p83 = por %p81, %p82
      %p84 = scmp.ne.s32.totalorder %s70, %s71
      %p85 = scmp.eq.s32.totalorder %s25, 2
      %p86 = por %p84, %p85
      %p88 = scmp.ne.s32.totalorder %s71, %s87
      %p89 = scmp.eq.s32.totalorder %s25, 0
      %p90 = por %p88, %p89
      %s91 = ssub.s32 %s26, %s38
      %p92 = scmp.eq.s32.totalorder %s91, 0
      %s94 = sadd.s32 %s93, 1
      %s95 = scalar_select %p92, %s93, %s94
      %p98 = pneg %p92
      %p99 = scmp.eq.s32.totalorder %s19, 2
      %p100 = por %p98, %p99
      %p101 = scmp.ne.s32.totalorder %s93, %s96
      %p102 = scmp.eq.s32.totalorder %s19, 0
      %p103 = por %p101, %p102
      %p104 = scmp.ne.s32.totalorder %s93, %s96
      %p105 = scmp.eq.s32.totalorder %s24, 2
      %p106 = por %p104, %p105
      %p107 = scmp.ne.s32.totalorder %s96, %s97
      %p108 = scmp.eq.s32.totalorder %s24, 0
      %p109 = por %p107, %p108
      %p110 = scmp.ne.s32.totalorder %s96, %s97
      %p111 = scmp.eq.s32.totalorder %s25, 2
      %p112 = por %p110, %p111
      %p114 = scmp.ne.s32.totalorder %s97, %s113
      %p115 = scmp.eq.s32.totalorder %s25, 0
      %p116 = por %p114, %p115
      %s118 = sadd.s32 %s117, 1
      %p121 = scmp.eq.s32.totalorder %s19, 2
      %p122 = scmp.ne.s32.totalorder %s117, %s119
      %p123 = scmp.eq.s32.totalorder %s19, 0
      %p124 = por %p122, %p123
      %p125 = scmp.ne.s32.totalorder %s117, %s119
      %p126 = scmp.eq.s32.totalorder %s24, 2
      %p127 = por %p125, %p126
      %p128 = scmp.ne.s32.totalorder %s119, %s120
      %p129 = scmp.eq.s32.totalorder %s24, 0
      %p130 = por %p128, %p129
      %p131 = scmp.ne.s32.totalorder %s119, %s120
      %p132 = scmp.eq.s32.totalorder %s25, 2
      %p133 = por %p131, %p132
      %p135 = scmp.ne.s32.totalorder %s120, %s134
      %p136 = scmp.eq.s32.totalorder %s25, 0
      %p137 = por %p135, %p136
      %s139 = sadd.s32 %s138, 1
      %p142 = scmp.eq.s32.totalorder %s19, 2
      %p143 = scmp.ne.s32.totalorder %s138, %s140
      %p144 = scmp.eq.s32.totalorder %s19, 0
      %p145 = por %p143, %p144
      %p146 = scmp.ne.s32.totalorder %s138, %s140
      %p147 = scmp.eq.s32.totalorder %s24, 2
      %p148 = por %p146, %p147
      %p149 = scmp.ne.s32.totalorder %s140, %s141
      %p150 = scmp.eq.s32.totalorder %s24, 0
      %p151 = por %p149, %p150
      %p152 = scmp.ne.s32.totalorder %s140, %s141
      %p153 = scmp.eq.s32.totalorder %s25, 2
      %p154 = por %p152, %p153
      %p156 = scmp.ne.s32.totalorder %s141, %s155
      %p157 = scmp.eq.s32.totalorder %s25, 0
      %p158 = por %p156, %p157
      %s160 = sadd.s32 %s159, 1
      %p163 = scmp.eq.s32.totalorder %s19, 2
      %p164 = scmp.ne.s32.totalorder %s159, %s161
      %p165 = scmp.eq.s32.totalorder %s19, 0
      %p166 = por %p164, %p165
      %p167 = scmp.ne.s32.totalorder %s159, %s161
      %p168 = scmp.eq.s32.totalorder %s24, 2
      %p169 = por %p167, %p168
      %p170 = scmp.ne.s32.totalorder %s161, %s162
      %p171 = scmp.eq.s32.totalorder %s24, 0
      %p172 = por %p170, %p171
      %p173 = scmp.ne.s32.totalorder %s161, %s162
      %p174 = scmp.eq.s32.totalorder %s25, 2
      %p175 = por %p173, %p174
      %p177 = scmp.ne.s32.totalorder %s162, %s176
      %p178 = scmp.eq.s32.totalorder %s25, 0
      %p179 = por %p177, %p178
      %s181 = sadd.s32 %s180, 1
      %p184 = scmp.eq.s32.totalorder %s19, 2
      %p185 = scmp.ne.s32.totalorder %s180, %s182
      %p186 = scmp.eq.s32.totalorder %s19, 0
      %p187 = por %p185, %p186
      %p188 = scmp.ne.s32.totalorder %s180, %s182
      %p189 = scmp.eq.s32.totalorder %s24, 2
      %p190 = por %p188, %p189
      %p191 = scmp.ne.s32.totalorder %s182, %s183
      %p192 = scmp.eq.s32.totalorder %s24, 0
      %p193 = por %p191, %p192
      %p194 = scmp.ne.s32.totalorder %s182, %s183
      %p195 = scmp.eq.s32.totalorder %s25, 2
      %p196 = por %p194, %p195
      %p198 = scmp.ne.s32.totalorder %s183, %s197
      %p199 = scmp.eq.s32.totalorder %s25, 0
      %p200 = por %p198, %p199
      %p201 = scmp.le.s32.totalorder 1, %s19
      %p202 = scmp.lt.s32.totalorder %s19, 4
      %p203 = pnand %p201, %p202
      %p204 = pneg %p203
      // Predicated region
      $region9: #{tpu_custom_call.1} parent=5 // pred_check
        _
      $region10: #{tpu_custom_call.1} parent=5 // pred_check_branch
        %206 = sbr.rel (%p203) target = $region12
      $region11: #{tpu_custom_call.1} parent=5 // pred_region
        %s207 = ssub.s32 %s19, 1
        // Predicated region
        $region13: #{tpu_custom_call.1} parent=11 // pred_check
          %p208 = pneg %p57
        $region14: #{tpu_custom_call.1} parent=11 // pred_check_branch
          %210 = sbr.rel (%p208) target = $region16
        $region15: #{tpu_custom_call.1} parent=11 // pred_region
          %s211 = smul.u32 16, %s29
          %s213 = ssub.s32 1024, 1024
          %214 = vsyncadd [#allocation7], %s213
          %s215 = smul.addr %s211, 64
          %s216 = scalar_lea.hbm %s1, %s215
          %s217 = sshll.u32 [#allocation6], 4
          %s218 = int_to_ptr.vmem [resolvable:$true] %s217
          %223 = dma.hbm_to_vmem [thread:$0]  %s216, 1024, %s218, [#allocation7], 64, 64, 4
        $region16: #{tpu_custom_call.1} parent=11 // pred_fallthru
          _
        // Predicated region
        $region17: #{tpu_custom_call.1} parent=11 // pred_check
          %p224 = pneg %p130
        $region18: #{tpu_custom_call.1} parent=11 // pred_check_branch
          %226 = sbr.rel (%p224) target = $region20
        $region19: #{tpu_custom_call.1} parent=11 // pred_region
          %s228 = ssub.s32 1024, 1024
          %229 = vsyncadd [#allocation10], %s228
          %s230 = sshll.u32 [#allocation11], 4
          %s231 = int_to_ptr.vmem [resolvable:$true] %s230
          %236 = dma.hbm_to_vmem [thread:$0]  %s4, 1024, %s231, [#allocation10], 64, 64, 4
        $region20: #{tpu_custom_call.1} parent=11 // pred_fallthru
          _
        // Predicated region
        $region21: #{tpu_custom_call.1} parent=11 // pred_check
          %p237 = pneg %p151
        $region22: #{tpu_custom_call.1} parent=11 // pred_check_branch
          %239 = sbr.rel (%p237) target = $region24
        $region23: #{tpu_custom_call.1} parent=11 // pred_region
          %s241 = ssub.s32 1024, 1024
          %242 = vsyncadd [#allocation13], %s241
          %s243 = sshll.u32 [#allocation12], 4
          %s244 = int_to_ptr.vmem [resolvable:$true] %s243
          %249 = dma.hbm_to_vmem [thread:$0]  %s5, 1024, %s244, [#allocation13], 64, 64, 4
        $region24: #{tpu_custom_call.1} parent=11 // pred_fallthru
          _
        // Predicated region
        $region25: #{tpu_custom_call.1} parent=11 // pred_check
          %p250 = pneg %p172
        $region26: #{tpu_custom_call.1} parent=11 // pred_check_branch
          %252 = sbr.rel (%p250) target = $region28
        $region27: #{tpu_custom_call.1} parent=11 // pred_region
          _
        $region28: #{tpu_custom_call.1} parent=11 // pred_fallthru
          _
      $region12: #{tpu_custom_call.1} parent=5 // pred_fallthru
        _
      %p253 = scmp.lt.s32.totalorder %s19, 3
      // Predicated region
      $region29: #{tpu_custom_call.1} parent=5 // pred_check
        %p254 = pneg %p253
      $region30: #{tpu_custom_call.1} parent=5 // pred_check_branch
        %256 = sbr.rel (%p254) target = $region32
      $region31: #{tpu_custom_call.1} parent=5 // pred_region
        // Predicated region
        $region33: #{tpu_custom_call.1} parent=31 // pred_check
          %p257 = pneg %p77
        $region34: #{tpu_custom_call.1} parent=31 // pred_check_branch
          %259 = sbr.rel (%p257) target = $region36
        $region35: #{tpu_custom_call.1} parent=31 // pred_region
          %s260 = sand.u32 %s19, 1
          %s261 = scalar_lea.sflag [#allocation10], %s260
          %s262 = sand.u32 %s67, 1
          %s263 = smul.addr %s262, 64
          %s264 = scalar_lea.vmem [#allocation9], %s263
          %s266 = ssub.s32 1024, 1024
          %267 = vsyncadd %s261, %s266
          %s268 = smul.addr %s26, 16
          %s269 = smul.addr %s268, 64
          %s270 = scalar_lea.hbm %s2, %s269
          %s271 = sshll.u32 %s264, 4
          %s272 = int_to_ptr.vmem [resolvable:$true] %s271
          %277 = dma.hbm_to_vmem [thread:$0]  %s270, 1024, %s272, %s261, 64, 64, 4
        $region36: #{tpu_custom_call.1} parent=31 // pred_fallthru
          _
        // Predicated region
        $region37: #{tpu_custom_call.1} parent=31 // pred_check
          %p278 = pneg %p103
        $region38: #{tpu_custom_call.1} parent=31 // pred_check_branch
          %280 = sbr.rel (%p278) target = $region40
        $region39: #{tpu_custom_call.1} parent=31 // pred_region
          %p281 = scmp.lt.s32.totalorder %s26, 2
          %s282 = scalar_select %p281, %s26, 2
          %s283 = scalar_lea.vmem %s3, %s282
        $region40: #{tpu_custom_call.1} parent=31 // pred_fallthru
          _
      $region32: #{tpu_custom_call.1} parent=5 // pred_fallthru
        _
      %p284 = scmp.le.s32.totalorder 1, %s19
      %p285 = scmp.lt.s32.totalorder %s19, 4
      %p286 = pnand %p284, %p285
      %p287 = pneg %p286
      // Predicated region
      $region41: #{tpu_custom_call.1} parent=5 // pred_check
        _
      $region42: #{tpu_custom_call.1} parent=5 // pred_check_branch
        %289 = sbr.rel (%p286) target = $region44
      $region43: #{tpu_custom_call.1} parent=5 // pred_region
        %s290 = ssub.s32 %s19, 1
        // Predicated region
        $region45: #{tpu_custom_call.1} parent=43 // pred_check
          %p291 = pneg %p57
        $region46: #{tpu_custom_call.1} parent=43 // pred_check_branch
          %293 = sbr.rel (%p291) target = $region48
        $region47: #{tpu_custom_call.1} parent=43 // pred_region
          %294 = dma.done [#allocation7], 1024
        $region48: #{tpu_custom_call.1} parent=43 // pred_fallthru
          _
        %s295 = sand.u32 %s24, 1
        %s296 = scalar_lea.sflag [#allocation10], %s295
        %s297 = sand.u32 %s70, 1
        %s298 = smul.addr %s297, 64
        %s299 = scalar_lea.vmem [#allocation9], %s298
        // Predicated region
        $region49: #{tpu_custom_call.1} parent=43 // pred_check
          %p300 = pneg %p83
        $region50: #{tpu_custom_call.1} parent=43 // pred_check_branch
          %302 = sbr.rel (%p300) target = $region52
        $region51: #{tpu_custom_call.1} parent=43 // pred_region
          %303 = dma.done %s296, 1024
        $region52: #{tpu_custom_call.1} parent=43 // pred_fallthru
          _
        // Predicated region
        $region53: #{tpu_custom_call.1} parent=43 // pred_check
          %p304 = pneg %p130
        $region54: #{tpu_custom_call.1} parent=43 // pred_check_branch
          %306 = sbr.rel (%p304) target = $region56
        $region55: #{tpu_custom_call.1} parent=43 // pred_region
          %307 = dma.done [#allocation10], 1024
        $region56: #{tpu_custom_call.1} parent=43 // pred_fallthru
          _
        // Predicated region
        $region57: #{tpu_custom_call.1} parent=43 // pred_check
          %p308 = pneg %p151
        $region58: #{tpu_custom_call.1} parent=43 // pred_check_branch
          %310 = sbr.rel (%p308) target = $region60
        $region59: #{tpu_custom_call.1} parent=43 // pred_region
          %311 = dma.done [#allocation13], 1024
        $region60: #{tpu_custom_call.1} parent=43 // pred_fallthru
          _
        %p312 = pneg %p57
        %p313 = pneg %p54
        %s314 = sand.u32 %s24, 1
        %s315 = scalar_lea.sflag [#allocation10], %s314
        %s316 = sand.u32 %s70, 1
        %s317 = smul.addr %s316, 64
        %s318 = scalar_lea.vmem [#allocation9], %s317
        %p319 = pneg %p83
        %p320 = pneg %p80
        %p321 = scmp.lt.s32.totalorder %s28, 2
        %s322 = scalar_select %p321, %s28, 2
        %s323 = scalar_lea.vmem %s3, %s322
        %p324 = pneg %p109
        %p325 = pneg %p106
        %p326 = pneg %p130
        %p327 = pneg %p127
        %p328 = pneg %p151
        %p329 = pneg %p148
        %p330 = pneg %p172
        %p331 = pneg %p169
        %p332 = pneg %p193
        %p333 = pneg %p190
        %s334 = smul.u32 16, %s29
        %p335 = scmp.lt.s32.totalorder %s28, 2
        %s336 = scalar_select %p335, %s28, 2
        %s337 = scalar_lea.vmem %s3, %s336
        %s339 = smul.u32 %s29, 128
        %p340 = scmp.eq.s32.totalorder %s28, 0
        %p341 = scmp.eq.s32.totalorder %s29, 0
        %p342 = pnand %p340, %p341
        %p343 = pneg %p342
        // Predicated region
        $region61: #{tpu_custom_call.1} parent=43 // pred_check
          _
        $region62: #{tpu_custom_call.1} parent=43 // pred_check_branch
          %345 = sbr.rel (%p342) target = $region64
        $region63: #{tpu_custom_call.1} parent=43 // pred_region
          // Predicated region
          $region65: #{tpu_custom_call.1} parent=63 // pred_check
            _
          $region66: #{tpu_custom_call.1} parent=63 // pred_check_branch
            %347 = sbr.rel target = $region68
          $region67: #{tpu_custom_call.1} parent=63 // pred_region
            %348 = sst [smem:[#allocation17]] [#allocation16]
            %349 = sst [smem:[#allocation18]] [#allocation15]
          $region68: #{tpu_custom_call.1} parent=63 // pred_fallthru
            _
          %351 = shalt.err (0)
          %s353 = sshll.u32 [#allocation2], 4
          %s354 = int_to_ptr.vmem [resolvable:$true] %s353
          %356 = dma.hbm_to_vmem [thread:$0]  %s0, 1024, %s354, [#allocation5]
          %s357 = smul.u32 4, 16
          %s358 = smul.u32 %s357, 1
          %s359 = sshll.u32 %s358, 4
          %360 = dma.done [#allocation5], %s359
        $region64: #{tpu_custom_call.1} parent=43 // pred_fallthru
          _
        %p361 = scmp.eq.s32.totalorder %s28, 2
        %p362 = pnand %p361, %p341
        %p363 = pneg %p362
        // Predicated region
        $region69: #{tpu_custom_call.1} parent=43 // pred_check
          _
        $region70: #{tpu_custom_call.1} parent=43 // pred_check_branch
          %365 = sbr.rel (%p362) target = $region72
        $region71: #{tpu_custom_call.1} parent=43 // pred_region
          %366 = vst [vmem:[#allocation3] sm:$0x1] 0.0
          %367 = vst [vmem:[#allocation4] sm:$0x1] 0.0
        $region72: #{tpu_custom_call.1} parent=43 // pred_fallthru
          _
        %p368 = scmp.lt.s32.totalorder %s28, 0
        %s369 = ssub.s32 0, %s28
        %s370 = scalar_select %p368, %s369, %s28
        %s371 = sand.u32 %s370, 1
        %s372 = ssub.s32 0, %s371
        %s373 = scalar_select %p368, %s372, %s371
        %s374 = ssub.s32 1, %s373
        %v375 = vld [vmem:[#allocation6] sm:$0xf]
        %v376 = vld [vmem:[#allocation6 + $0x4] sm:$0xf]
        %v377 = vld [vmem:[#allocation6 + $0x8] sm:$0xf]
        %v378 = vld [vmem:[#allocation6 + $0xc] sm:$0xf]
        %v379 = vld [vmem:[#allocation6 + $0x10] sm:$0xf]
        %v380 = vld [vmem:[#allocation6 + $0x14] sm:$0xf]
        %v381 = vld [vmem:[#allocation6 + $0x18] sm:$0xf]
        %v382 = vld [vmem:[#allocation6 + $0x1c] sm:$0xf]
        %v383 = vld [vmem:[#allocation6 + $0x20] sm:$0xf]
        %v384 = vld [vmem:[#allocation6 + $0x24] sm:$0xf]
        %v385 = vld [vmem:[#allocation6 + $0x28] sm:$0xf]
        %v386 = vld [vmem:[#allocation6 + $0x2c] sm:$0xf]
        %v387 = vld [vmem:[#allocation6 + $0x30] sm:$0xf]
        %v388 = vld [vmem:[#allocation6 + $0x34] sm:$0xf]
        %v389 = vld [vmem:[#allocation6 + $0x38] sm:$0xf]
        %v390 = vld [vmem:[#allocation6 + $0x3c] sm:$0xf]
        %s391 = smul.u32 %s373, 16
        %s392 = smul.addr %s391, 4
        %s393 = scalar_lea.vmem [#allocation2], %s392
        %v394 = vld [vmem:[%s393] sm:$0xf]
        %v395 = vld [vmem:[%s393 + $0x4] sm:$0xf]
        %v396 = vld [vmem:[%s393 + $0x8] sm:$0xf]
        %v397 = vld [vmem:[%s393 + $0xc] sm:$0xf]
        %v398 = vld [vmem:[%s393 + $0x10] sm:$0xf]
        %v399 = vld [vmem:[%s393 + $0x14] sm:$0xf]
        %v400 = vld [vmem:[%s393 + $0x18] sm:$0xf]
        %v401 = vld [vmem:[%s393 + $0x1c] sm:$0xf]
        %v402 = vld [vmem:[%s393 + $0x20] sm:$0xf]
        %v403 = vld [vmem:[%s393 + $0x24] sm:$0xf]
        %v404 = vld [vmem:[%s393 + $0x28] sm:$0xf]
        %v405 = vld [vmem:[%s393 + $0x2c] sm:$0xf]
        %v406 = vld [vmem:[%s393 + $0x30] sm:$0xf]
        %v407 = vld [vmem:[%s393 + $0x34] sm:$0xf]
        %v408 = vld [vmem:[%s393 + $0x38] sm:$0xf]
        %v409 = vld [vmem:[%s393 + $0x3c] sm:$0xf]
        %s410 = sshra.s32 %s339, 3
        %s411 = sand.u32 %s339, 7
        %s412 = sadd.s32 %s410, %s391
        %s413 = smul.addr %s412, 4
        %s414 = scalar_lea.vmem [#allocation2], %s413
        %v415 = vld [vmem:[%s414] sm:$0xf]
        %v416 = vld [vmem:[%s414 + $0x4] sm:$0xf]
        %v417 = vld [vmem:[%s414 + $0x8] sm:$0xf]
        %v418 = vld [vmem:[%s414 + $0xc] sm:$0xf]
        %v419 = vld [vmem:[%s414 + $0x10] sm:$0xf]
        %v420 = vld [vmem:[%s414 + $0x14] sm:$0xf]
        %v421 = vld [vmem:[%s414 + $0x18] sm:$0xf]
        %v422 = vld [vmem:[%s414 + $0x1c] sm:$0xf]
        %v423 = vld [vmem:[%s414 + $0x20] sm:$0xf]
        %v424 = vld [vmem:[%s414 + $0x24] sm:$0xf]
        %v425 = vld [vmem:[%s414 + $0x28] sm:$0xf]
        %v426 = vld [vmem:[%s414 + $0x2c] sm:$0xf]
        %v427 = vld [vmem:[%s414 + $0x30] sm:$0xf]
        %v428 = vld [vmem:[%s414 + $0x34] sm:$0xf]
        %v429 = vld [vmem:[%s414 + $0x38] sm:$0xf]
        %v430 = vld [vmem:[%s414 + $0x3c] sm:$0xf]
        %v431 = vunpack.c.l.bf16 %v415
        %v432 = vunpack.c.l.bf16 %v416
        %v433 = vunpack.c.l.bf16 %v417
        %v434 = vunpack.c.l.bf16 %v418
        %v435 = vunpack.c.l.bf16 %v419
        %v436 = vunpack.c.l.bf16 %v420
        %v437 = vunpack.c.l.bf16 %v421
        %v438 = vunpack.c.l.bf16 %v422
        %v439 = vunpack.c.l.bf16 %v423
        %v440 = vunpack.c.l.bf16 %v424
        %v441 = vunpack.c.l.bf16 %v425
        %v442 = vunpack.c.l.bf16 %v426
        %v443 = vunpack.c.l.bf16 %v427
        %v444 = vunpack.c.l.bf16 %v428
        %v445 = vunpack.c.l.bf16 %v429
        %v446 = vunpack.c.l.bf16 %v430
        %v463 = vunpack.c.l.b16 %v375
        %v464 = vunpack.c.l.b16 %v376
        %v465 = vunpack.c.l.b16 %v377
        %v466 = vunpack.c.l.b16 %v378
        %v467 = vunpack.c.l.b16 %v379
        %v468 = vunpack.c.l.b16 %v380
        %v469 = vunpack.c.l.b16 %v381
        %v470 = vunpack.c.l.b16 %v382
        %v471 = vunpack.c.l.b16 %v383
        %v472 = vunpack.c.l.b16 %v384
        %v473 = vunpack.c.l.b16 %v385
        %v474 = vunpack.c.l.b16 %v386
        %v475 = vunpack.c.l.b16 %v387
        %v476 = vunpack.c.l.b16 %v388
        %v477 = vunpack.c.l.b16 %v389
        %v478 = vunpack.c.l.b16 %v390
        %v479 = vpack.c.b16 %v464, %v463
        %v480 = vpack.c.b16 %v466, %v465
        %v481 = vpack.c.b16 %v468, %v467
        %v482 = vpack.c.b16 %v470, %v469
        %v483 = vpack.c.b16 %v472, %v471
        %v484 = vpack.c.b16 %v474, %v473
        %v485 = vpack.c.b16 %v476, %v475
        %v486 = vpack.c.b16 %v478, %v477
        %v511 = vunpack.c.l.b16 %v394
        %v512 = vunpack.c.l.b16 %v395
        %v513 = vunpack.c.l.b16 %v396
        %v514 = vunpack.c.l.b16 %v397
        %v515 = vunpack.c.l.b16 %v398
        %v516 = vunpack.c.l.b16 %v399
        %v517 = vunpack.c.l.b16 %v400
        %v518 = vunpack.c.l.b16 %v401
        %v519 = vunpack.c.l.b16 %v402
        %v520 = vunpack.c.l.b16 %v403
        %v521 = vunpack.c.l.b16 %v404
        %v522 = vunpack.c.l.b16 %v405
        %v523 = vunpack.c.l.b16 %v406
        %v524 = vunpack.c.l.b16 %v407
        %v525 = vunpack.c.l.b16 %v408
        %v526 = vunpack.c.l.b16 %v409
        %v527 = vpack.c.b16 %v512, %v511
        %v528 = vpack.c.b16 %v514, %v513
        %v529 = vpack.c.b16 %v516, %v515
        %v530 = vpack.c.b16 %v518, %v517
        %v531 = vpack.c.b16 %v520, %v519
        %v532 = vpack.c.b16 %v522, %v521
        %v533 = vpack.c.b16 %v524, %v523
        %v534 = vpack.c.b16 %v526, %v525
        %543 = vmatprep.subr.bf16.mxu0 0
        %544 = vmatpush1.bf16.msra.mxu0 %v534
        %545 = vmatprep.subr.bf16.mxu0 0
        %546 = vmatpush1.bf16.msra.mxu0 %v533
        %547 = vmatprep.subr.bf16.mxu0 0
        %548 = vmatpush1.bf16.msra.mxu0 %v532
        %549 = vmatprep.subr.bf16.mxu0 0
        %550 = vmatpush1.bf16.msra.mxu0 %v531
        %551 = vmatprep.subr.bf16.mxu0 0
        %552 = vmatpush1.bf16.msra.mxu0 %v530
        %553 = vmatprep.subr.bf16.mxu0 0
        %554 = vmatpush1.bf16.msra.mxu0 %v529
        %555 = vmatprep.subr.bf16.mxu0 0
        %556 = vmatpush1.bf16.msra.mxu0 %v528
        %557 = vmatprep.subr.bf16.mxu0 0
        %558 = vmatpush1.bf16.msra.mxu0 %v527
        %559 = vmatprep.subr.bf16.mxu0 0
        %560 = vmatpush2.bf16.msra.mxu0 0
        %561 = vmatprep.subr.bf16.mxu0 0
        %562 = vmatpush2.bf16.msra.mxu0 0
        %563 = vmatprep.subr.bf16.mxu0 0
        %564 = vmatpush2.bf16.msra.mxu0 0
        %565 = vmatprep.subr.bf16.mxu0 0
        %566 = vmatpush2.bf16.msra.mxu0 0
        %567 = vmatprep.subr.bf16.mxu0 0
        %568 = vmatpush2.bf16.msra.mxu0 0
        %569 = vmatprep.subr.bf16.mxu0 0
        %570 = vmatpush2.bf16.msra.mxu0 0
        %571 = vmatprep.subr.bf16.mxu0 0
        %572 = vmatpush2.bf16.msra.mxu0 0
        %573 = vmatprep.subr.bf16.mxu0 0
        %574 = vmatpush2.bf16.msra.mxu0 0
        %575 = vmatprep.mubr.bf16.mxu0 0
        %576 = vmatmul.mubr.bf16.gmra.mxu0 %v479
        %v577 = vpop.f32.mrf.mxu0
        %v578 = vadd.f32 %v431, %v577
        %v579 = vpop.f32.mrf.mxu0
        %v580 = vpop.f32.mrf.mxu0
        %v581 = vadd.f32 %v432, %v580
        %v582 = vpop.f32.mrf.mxu0
        %583 = vmatprep.mubr.bf16.mxu0 0
        %584 = vmatmul.mubr.bf16.gmra.mxu0 %v480
        %v585 = vpop.f32.mrf.mxu0
        %v586 = vadd.f32 %v433, %v585
        %v587 = vpop.f32.mrf.mxu0
        %v588 = vpop.f32.mrf.mxu0
        %v589 = vadd.f32 %v434, %v588
        %v590 = vpop.f32.mrf.mxu0
        %591 = vmatprep.mubr.bf16.mxu0 0
        %592 = vmatmul.mubr.bf16.gmra.mxu0 %v481
        %v593 = vpop.f32.mrf.mxu0
        %v594 = vadd.f32 %v435, %v593
        %v595 = vpop.f32.mrf.mxu0
        %v596 = vpop.f32.mrf.mxu0
        %v597 = vadd.f32 %v436, %v596
        %v598 = vpop.f32.mrf.mxu0
        %599 = vmatprep.mubr.bf16.mxu0 0
        %600 = vmatmul.mubr.bf16.gmra.mxu0 %v482
        %v601 = vpop.f32.mrf.mxu0
        %v602 = vadd.f32 %v437, %v601
        %v603 = vpop.f32.mrf.mxu0
        %v604 = vpop.f32.mrf.mxu0
        %v605 = vadd.f32 %v438, %v604
        %v606 = vpop.f32.mrf.mxu0
        %607 = vmatprep.mubr.bf16.mxu0 0
        %608 = vmatmul.mubr.bf16.gmra.mxu0 %v483
        %v609 = vpop.f32.mrf.mxu0
        %v610 = vadd.f32 %v439, %v609
        %v611 = vpop.f32.mrf.mxu0
        %v612 = vpop.f32.mrf.mxu0
        %v613 = vadd.f32 %v440, %v612
        %v614 = vpop.f32.mrf.mxu0
        %615 = vmatprep.mubr.bf16.mxu0 0
        %616 = vmatmul.mubr.bf16.gmra.mxu0 %v484
        %v617 = vpop.f32.mrf.mxu0
        %v618 = vadd.f32 %v441, %v617
        %v619 = vpop.f32.mrf.mxu0
        %v620 = vpop.f32.mrf.mxu0
        %v621 = vadd.f32 %v442, %v620
        %v622 = vpop.f32.mrf.mxu0
        %623 = vmatprep.mubr.bf16.mxu0 0
        %624 = vmatmul.mubr.bf16.gmra.mxu0 %v485
        %v625 = vpop.f32.mrf.mxu0
        %v626 = vadd.f32 %v443, %v625
        %v627 = vpop.f32.mrf.mxu0
        %v628 = vpop.f32.mrf.mxu0
        %v629 = vadd.f32 %v444, %v628
        %v630 = vpop.f32.mrf.mxu0
        %631 = vmatprep.mubr.bf16.mxu0 0
        %632 = vmatmul.mubr.bf16.gmra.mxu0 %v486
        %v633 = vpop.f32.mrf.mxu0
        %v634 = vadd.f32 %v445, %v633
        %v635 = vpop.f32.mrf.mxu0
        %v636 = vpop.f32.mrf.mxu0
        %v637 = vadd.f32 %v446, %v636
        %v638 = vpop.f32.mrf.mxu0
        %639 = vdwg.mxu0
        %v640 = vpack.c.bf16 %v581, %v578
        %v641 = vpack.c.bf16 %v589, %v586
        %v642 = vpack.c.bf16 %v597, %v594
        %v643 = vpack.c.bf16 %v605, %v602
        %v644 = vpack.c.bf16 %v613, %v610
        %v645 = vpack.c.bf16 %v621, %v618
        %v646 = vpack.c.bf16 %v629, %v626
        %v647 = vpack.c.bf16 %v637, %v634
        %v648 = vld [vmem:[%s299] sm:$0xf]
        %v649 = vld [vmem:[%s299 + $0x4] sm:$0xf]
        %v650 = vld [vmem:[%s299 + $0x8] sm:$0xf]
        %v651 = vld [vmem:[%s299 + $0xc] sm:$0xf]
        %v652 = vld [vmem:[%s299 + $0x10] sm:$0xf]
        %v653 = vld [vmem:[%s299 + $0x14] sm:$0xf]
        %v654 = vld [vmem:[%s299 + $0x18] sm:$0xf]
        %v655 = vld [vmem:[%s299 + $0x1c] sm:$0xf]
        %v656 = vld [vmem:[%s299 + $0x20] sm:$0xf]
        %v657 = vld [vmem:[%s299 + $0x24] sm:$0xf]
        %v658 = vld [vmem:[%s299 + $0x28] sm:$0xf]
        %v659 = vld [vmem:[%s299 + $0x2c] sm:$0xf]
        %v660 = vld [vmem:[%s299 + $0x30] sm:$0xf]
        %v661 = vld [vmem:[%s299 + $0x34] sm:$0xf]
        %v662 = vld [vmem:[%s299 + $0x38] sm:$0xf]
        %v663 = vld [vmem:[%s299 + $0x3c] sm:$0xf]
        %v664 = vld [vmem:[%s337] sm:$0x1]
        %v666 = vlaneseq
        %v667 = vshrl.u32 %v666, 7
        %v668 = vsub.s32 0, %v667
        %v669 = vrot.slane %v664, %v668
        %v687 = vunpack.c.l.b16 %v648
        %v688 = vunpack.c.l.b16 %v649
        %v689 = vunpack.c.l.b16 %v650
        %v690 = vunpack.c.l.b16 %v651
        %v691 = vunpack.c.l.b16 %v652
        %v692 = vunpack.c.l.b16 %v653
        %v693 = vunpack.c.l.b16 %v654
        %v694 = vunpack.c.l.b16 %v655
        %v695 = vunpack.c.l.b16 %v656
        %v696 = vunpack.c.l.b16 %v657
        %v697 = vunpack.c.l.b16 %v658
        %v698 = vunpack.c.l.b16 %v659
        %v699 = vunpack.c.l.b16 %v660
        %v700 = vunpack.c.l.b16 %v661
        %v701 = vunpack.c.l.b16 %v662
        %v702 = vunpack.c.l.b16 %v663
        %v703 = vpack.c.b16 %v688, %v687
        %v704 = vpack.c.b16 %v690, %v689
        %v705 = vpack.c.b16 %v692, %v691
        %v706 = vpack.c.b16 %v694, %v693
        %v707 = vpack.c.b16 %v696, %v695
        %v708 = vpack.c.b16 %v698, %v697
        %v709 = vpack.c.b16 %v700, %v699
        %v710 = vpack.c.b16 %v702, %v701
        %719 = vmatprep.subr.bf16.mxu0 0
        %720 = vmatpush1.bf16.msra.mxu0 %v710
        %721 = vmatprep.subr.bf16.mxu0 0
        %722 = vmatpush1.bf16.msra.mxu0 %v709
        %723 = vmatprep.subr.bf16.mxu0 0
        %724 = vmatpush1.bf16.msra.mxu0 %v708
        %725 = vmatprep.subr.bf16.mxu0 0
        %726 = vmatpush1.bf16.msra.mxu0 %v707
        %727 = vmatprep.subr.bf16.mxu0 0
        %728 = vmatpush1.bf16.msra.mxu0 %v706
        %729 = vmatprep.subr.bf16.mxu0 0
        %730 = vmatpush1.bf16.msra.mxu0 %v705
        %731 = vmatprep.subr.bf16.mxu0 0
        %732 = vmatpush1.bf16.msra.mxu0 %v704
        %733 = vmatprep.subr.bf16.mxu0 0
        %734 = vmatpush1.bf16.msra.mxu0 %v703
        %735 = vmatprep.subr.bf16.mxu0 0
        %736 = vmatpush2.bf16.msra.mxu0 0
        %737 = vmatprep.subr.bf16.mxu0 0
        %738 = vmatpush2.bf16.msra.mxu0 0
        %739 = vmatprep.subr.bf16.mxu0 0
        %740 = vmatpush2.bf16.msra.mxu0 0
        %741 = vmatprep.subr.bf16.mxu0 0
        %742 = vmatpush2.bf16.msra.mxu0 0
        %743 = vmatprep.subr.bf16.mxu0 0
        %744 = vmatpush2.bf16.msra.mxu0 0
        %745 = vmatprep.subr.bf16.mxu0 0
        %746 = vmatpush2.bf16.msra.mxu0 0
        %747 = vmatprep.subr.bf16.mxu0 0
        %748 = vmatpush2.bf16.msra.mxu0 0
        %749 = vmatprep.subr.bf16.mxu0 0
        %750 = vmatpush2.bf16.msra.mxu0 0
        %751 = vmatprep.mubr.bf16.mxu0 0
        %752 = vmatmul.mubr.bf16.gmra.mxu0 %v640
        %v753 = vpop.f32.mrf.mxu0
        %v754 = vadd.f32 %v669, %v753
        %v755 = vpop.f32.mrf.mxu0
        %v756 = vpop.f32.mrf.mxu0
        %v757 = vadd.f32 %v669, %v756
        %v758 = vpop.f32.mrf.mxu0
        %759 = vmatprep.mubr.bf16.mxu0 0
        %760 = vmatmul.mubr.bf16.gmra.mxu0 %v641
        %v761 = vpop.f32.mrf.mxu0
        %v762 = vadd.f32 %v669, %v761
        %v763 = vpop.f32.mrf.mxu0
        %v764 = vpop.f32.mrf.mxu0
        %v765 = vadd.f32 %v669, %v764
        %v766 = vpop.f32.mrf.mxu0
        %767 = vmatprep.mubr.bf16.mxu0 0
        %768 = vmatmul.mubr.bf16.gmra.mxu0 %v642
        %v769 = vpop.f32.mrf.mxu0
        %v770 = vadd.f32 %v669, %v769
        %v771 = vpop.f32.mrf.mxu0
        %v772 = vpop.f32.mrf.mxu0
        %v773 = vadd.f32 %v669, %v772
        %v774 = vpop.f32.mrf.mxu0
        %775 = vmatprep.mubr.bf16.mxu0 0
        %776 = vmatmul.mubr.bf16.gmra.mxu0 %v643
        %v777 = vpop.f32.mrf.mxu0
        %v778 = vadd.f32 %v669, %v777
        %v779 = vpop.f32.mrf.mxu0
        %v780 = vpop.f32.mrf.mxu0
        %v781 = vadd.f32 %v669, %v780
        %v782 = vpop.f32.mrf.mxu0
        %783 = vmatprep.mubr.bf16.mxu0 0
        %784 = vmatmul.mubr.bf16.gmra.mxu0 %v644
        %v785 = vpop.f32.mrf.mxu0
        %v786 = vadd.f32 %v669, %v785
        %v787 = vpop.f32.mrf.mxu0
        %v788 = vpop.f32.mrf.mxu0
        %v789 = vadd.f32 %v669, %v788
        %v790 = vpop.f32.mrf.mxu0
        %791 = vmatprep.mubr.bf16.mxu0 0
        %792 = vmatmul.mubr.bf16.gmra.mxu0 %v645
        %v793 = vpop.f32.mrf.mxu0
        %v794 = vadd.f32 %v669, %v793
        %v795 = vpop.f32.mrf.mxu0
        %v796 = vpop.f32.mrf.mxu0
        %v797 = vadd.f32 %v669, %v796
        %v798 = vpop.f32.mrf.mxu0
        %799 = vmatprep.mubr.bf16.mxu0 0
        %800 = vmatmul.mubr.bf16.gmra.mxu0 %v646
        %v801 = vpop.f32.mrf.mxu0
        %v802 = vadd.f32 %v669, %v801
        %v803 = vpop.f32.mrf.mxu0
        %v804 = vpop.f32.mrf.mxu0
        %v805 = vadd.f32 %v669, %v804
        %v806 = vpop.f32.mrf.mxu0
        %807 = vmatprep.mubr.bf16.mxu0 0
        %808 = vmatmul.mubr.bf16.gmra.mxu0 %v647
        %v809 = vpop.f32.mrf.mxu0
        %v810 = vadd.f32 %v669, %v809
        %v811 = vpop.f32.mrf.mxu0
        %v812 = vpop.f32.mrf.mxu0
        %v813 = vadd.f32 %v669, %v812
        %v814 = vpop.f32.mrf.mxu0
        %815 = vdwg.mxu0
        %v816 = vmax.f32 %v754, 0.0
        %v817 = vmax.f32 %v757, 0.0
        %v818 = vmax.f32 %v762, 0.0
        %v819 = vmax.f32 %v765, 0.0
        %v820 = vmax.f32 %v770, 0.0
        %v821 = vmax.f32 %v773, 0.0
        %v822 = vmax.f32 %v778, 0.0
        %v823 = vmax.f32 %v781, 0.0
        %v824 = vmax.f32 %v786, 0.0
        %v825 = vmax.f32 %v789, 0.0
        %v826 = vmax.f32 %v794, 0.0
        %v827 = vmax.f32 %v797, 0.0
        %v828 = vmax.f32 %v802, 0.0
        %v829 = vmax.f32 %v805, 0.0
        %v830 = vmax.f32 %v810, 0.0
        %v831 = vmax.f32 %v813, 0.0
        %v832 = vpack.c.bf16 %v817, %v816
        %v833 = vpack.c.bf16 %v819, %v818
        %v834 = vpack.c.bf16 %v821, %v820
        %v835 = vpack.c.bf16 %v823, %v822
        %v836 = vpack.c.bf16 %v825, %v824
        %v837 = vpack.c.bf16 %v827, %v826
        %v838 = vpack.c.bf16 %v829, %v828
        %v839 = vpack.c.bf16 %v831, %v830
        %v848 = vunpack.c.l.b16 %v832
        %v849 = vunpack.c.h.b16 %v832
        %v850 = vunpack.c.l.b16 %v833
        %v851 = vunpack.c.h.b16 %v833
        %v852 = vunpack.c.l.b16 %v834
        %v853 = vunpack.c.h.b16 %v834
        %v854 = vunpack.c.l.b16 %v835
        %v855 = vunpack.c.h.b16 %v835
        %v856 = vunpack.c.l.b16 %v836
        %v857 = vunpack.c.h.b16 %v836
        %v858 = vunpack.c.l.b16 %v837
        %v859 = vunpack.c.h.b16 %v837
        %v860 = vunpack.c.l.b16 %v838
        %v861 = vunpack.c.h.b16 %v838
        %v862 = vunpack.c.l.b16 %v839
        %v863 = vunpack.c.h.b16 %v839
        %v864 = vpack.c.b16 %v848, %v848
        %v865 = vpack.c.b16 %v849, %v849
        %v866 = vpack.c.b16 %v850, %v850
        %v867 = vpack.c.b16 %v851, %v851
        %v868 = vpack.c.b16 %v852, %v852
        %v869 = vpack.c.b16 %v853, %v853
        %v870 = vpack.c.b16 %v854, %v854
        %v871 = vpack.c.b16 %v855, %v855
        %v872 = vpack.c.b16 %v856, %v856
        %v873 = vpack.c.b16 %v857, %v857
        %v874 = vpack.c.b16 %v858, %v858
        %v875 = vpack.c.b16 %v859, %v859
        %v876 = vpack.c.b16 %v860, %v860
        %v877 = vpack.c.b16 %v861, %v861
        %v878 = vpack.c.b16 %v862, %v862
        %v879 = vpack.c.b16 %v863, %v863
        %s896 = smul.u32 %s374, 16
        %s897 = sadd.s32 %s410, %s896
        %s898 = smul.addr %s897, 4
        %s899 = scalar_lea.vmem [#allocation2], %s898
        %900 = vst [vmem:[%s899] sm:$0xf] %v864
        %901 = vst [vmem:[%s899 + $0x4] sm:$0xf] %v865
        %902 = vst [vmem:[%s899 + $0x8] sm:$0xf] %v866
        %903 = vst [vmem:[%s899 + $0xc] sm:$0xf] %v867
        %904 = vst [vmem:[%s899 + $0x10] sm:$0xf] %v868
        %905 = vst [vmem:[%s899 + $0x14] sm:$0xf] %v869
        %906 = vst [vmem:[%s899 + $0x18] sm:$0xf] %v870
        %907 = vst [vmem:[%s899 + $0x1c] sm:$0xf] %v871
        %908 = vst [vmem:[%s899 + $0x20] sm:$0xf] %v872
        %909 = vst [vmem:[%s899 + $0x24] sm:$0xf] %v873
        %910 = vst [vmem:[%s899 + $0x28] sm:$0xf] %v874
        %911 = vst [vmem:[%s899 + $0x2c] sm:$0xf] %v875
        %912 = vst [vmem:[%s899 + $0x30] sm:$0xf] %v876
        %913 = vst [vmem:[%s899 + $0x34] sm:$0xf] %v877
        %914 = vst [vmem:[%s899 + $0x38] sm:$0xf] %v878
        %915 = vst [vmem:[%s899 + $0x3c] sm:$0xf] %v879
        // Predicated region
        $region73: #{tpu_custom_call.1} parent=43 // pred_check
          %p916 = pneg %p361
        $region74: #{tpu_custom_call.1} parent=43 // pred_check_branch
          %918 = sbr.rel (%p916) target = $region76
        $region75: #{tpu_custom_call.1} parent=43 // pred_region
          %v919 = vlaneseq
          %v920 = vshrl.u32 %v919, 7
          %v921 = vadd.s32 %v920, 8
          %v922 = vadd.s32 %v920, 16
          %v923 = vadd.s32 %v920, 24
          %v924 = vadd.s32 %v920, 32
          %v925 = vadd.s32 %v920, 40
          %v926 = vadd.s32 %v920, 48
          %v927 = vadd.s32 %v920, 56
          %v928 = vadd.s32 %v920, 64
          %v929 = vadd.s32 %v920, 72
          %v930 = vadd.s32 %v920, 80
          %v931 = vadd.s32 %v920, 88
          %v932 = vadd.s32 %v920, 96
          %v933 = vadd.s32 %v920, 104
          %v934 = vadd.s32 %v920, 112
          %v935 = vadd.s32 %v920, 120
          %v936 = vstv %s339
          %v937 = vadd.s32 %v936, %v920
          %v938 = vadd.s32 %v936, %v921
          %v939 = vadd.s32 %v936, %v922
          %v940 = vadd.s32 %v936, %v923
          %v941 = vadd.s32 %v936, %v924
          %v942 = vadd.s32 %v936, %v925
          %v943 = vadd.s32 %v936, %v926
          %v944 = vadd.s32 %v936, %v927
          %v945 = vadd.s32 %v936, %v928
          %v946 = vadd.s32 %v936, %v929
          %v947 = vadd.s32 %v936, %v930
          %v948 = vadd.s32 %v936, %v931
          %v949 = vadd.s32 %v936, %v932
          %v950 = vadd.s32 %v936, %v933
          %v951 = vadd.s32 %v936, %v934
          %v952 = vadd.s32 %v936, %v935
          %vm953 = vcmp.lt.s32.totalorder %v937, 16
          %vm954 = vcmp.lt.s32.totalorder %v938, 16
          %vm955 = vcmp.lt.s32.totalorder %v939, 16
          %vm956 = vcmp.lt.s32.totalorder %v940, 16
          %vm957 = vcmp.lt.s32.totalorder %v941, 16
          %vm958 = vcmp.lt.s32.totalorder %v942, 16
          %vm959 = vcmp.lt.s32.totalorder %v943, 16
          %vm960 = vcmp.lt.s32.totalorder %v944, 16
          %vm961 = vcmp.lt.s32.totalorder %v945, 16
          %vm962 = vcmp.lt.s32.totalorder %v946, 16
          %vm963 = vcmp.lt.s32.totalorder %v947, 16
          %vm964 = vcmp.lt.s32.totalorder %v948, 16
          %vm965 = vcmp.lt.s32.totalorder %v949, 16
          %vm966 = vcmp.lt.s32.totalorder %v950, 16
          %vm967 = vcmp.lt.s32.totalorder %v951, 16
          %vm968 = vcmp.lt.s32.totalorder %v952, 16
          %v969 = vsel %vm953, 1, 0
          %v970 = vsel %vm954, 1, 0
          %v971 = vsel %vm955, 1, 0
          %v972 = vsel %vm956, 1, 0
          %v973 = vsel %vm957, 1, 0
          %v974 = vsel %vm958, 1, 0
          %v975 = vsel %vm959, 1, 0
          %v976 = vsel %vm960, 1, 0
          %v977 = vsel %vm961, 1, 0
          %v978 = vsel %vm962, 1, 0
          %v979 = vsel %vm963, 1, 0
          %v980 = vsel %vm964, 1, 0
          %v981 = vsel %vm965, 1, 0
          %v982 = vsel %vm966, 1, 0
          %v983 = vsel %vm967, 1, 0
          %v984 = vsel %vm968, 1, 0
          %vm985 = vcmp.eq.s32.totalorder %v969, 1
          %vm986 = vcmp.eq.s32.totalorder %v970, 1
          %vm987 = vcmp.eq.s32.totalorder %v971, 1
          %vm988 = vcmp.eq.s32.totalorder %v972, 1
          %vm989 = vcmp.eq.s32.totalorder %v973, 1
          %vm990 = vcmp.eq.s32.totalorder %v974, 1
          %vm991 = vcmp.eq.s32.totalorder %v975, 1
          %vm992 = vcmp.eq.s32.totalorder %v976, 1
          %vm993 = vcmp.eq.s32.totalorder %v977, 1
          %vm994 = vcmp.eq.s32.totalorder %v978, 1
          %vm995 = vcmp.eq.s32.totalorder %v979, 1
          %vm996 = vcmp.eq.s32.totalorder %v980, 1
          %vm997 = vcmp.eq.s32.totalorder %v981, 1
          %vm998 = vcmp.eq.s32.totalorder %v982, 1
          %vm999 = vcmp.eq.s32.totalorder %v983, 1
          %vm1000 = vcmp.eq.s32.totalorder %v984, 1
          %v1001 = vsel %vm985, %v816, 0.0
          %v1002 = vsel %vm986, %v817, 0.0
          %v1003 = vsel %vm987, %v818, 0.0
          %v1004 = vsel %vm988, %v819, 0.0
          %v1005 = vsel %vm989, %v820, 0.0
          %v1006 = vsel %vm990, %v821, 0.0
          %v1007 = vsel %vm991, %v822, 0.0
          %v1008 = vsel %vm992, %v823, 0.0
          %v1009 = vsel %vm993, %v824, 0.0
          %v1010 = vsel %vm994, %v825, 0.0
          %v1011 = vsel %vm995, %v826, 0.0
          %v1012 = vsel %vm996, %v827, 0.0
          %v1013 = vsel %vm997, %v828, 0.0
          %v1014 = vsel %vm998, %v829, 0.0
          %v1015 = vsel %vm999, %v830, 0.0
          %v1016 = vsel %vm1000, %v831, 0.0
          %v1017 = vld [vmem:[#allocation3] sm:$0x1]
          %v1018 = vmax.f32 %v1001, %v1005
          %v1019 = vmax.f32 %v1002, %v1006
          %v1020 = vmax.f32 %v1003, %v1007
          %v1021 = vmax.f32 %v1004, %v1008
          %v1022 = vmax.f32 %v1018, %v1009
          %v1023 = vmax.f32 %v1019, %v1010
          %v1024 = vmax.f32 %v1020, %v1011
          %v1025 = vmax.f32 %v1021, %v1012
          %v1026 = vmax.f32 %v1022, %v1013
          %v1027 = vmax.f32 %v1023, %v1014
          %v1028 = vmax.f32 %v1024, %v1015
          %v1029 = vmax.f32 %v1025, %v1016
          %v1030 = vmax.f32 %v1026, %v1027
          %v1031 = vmax.f32 %v1028, %v1029
          %v1032 = vmax.f32 %v1030, %v1031
          %v1033 = vrot.slane %v1032, 4
          %v1034 = vmax.f32 %v1032, %v1033
          %v1035 = vrot.slane %v1034, 2
          %v1036 = vmax.f32 %v1034, %v1035
          %v1037 = vrot.slane %v1036, 1
          %v1038 = vmax.f32 %v1036, %v1037
          %v1039 = vmax.f32 %v1017, %v1038
          %1040 = vst [vmem:[#allocation3] sm:$0x1] %v1039
          %v1041 = vld [vmem:[#allocation4] sm:$0x1]
          %v1042 = vadd.f32 %v1001, %v1002
          %v1043 = vadd.f32 %v1042, %v1003
          %v1044 = vadd.f32 %v1043, %v1004
          %v1045 = vadd.f32 %v1044, %v1005
          %v1046 = vadd.f32 %v1045, %v1006
          %v1047 = vadd.f32 %v1046, %v1007
          %v1048 = vadd.f32 %v1047, %v1008
          %v1049 = vadd.f32 %v1048, %v1009
          %v1050 = vadd.f32 %v1049, %v1010
          %v1051 = vadd.f32 %v1050, %v1011
          %v1052 = vadd.f32 %v1051, %v1012
          %v1053 = vadd.f32 %v1052, %v1013
          %v1054 = vadd.f32 %v1053, %v1014
          %v1055 = vadd.f32 %v1054, %v1015
          %v1056 = vadd.f32 %v1055, %v1016
          %v1057 = vrot.slane %v1056, 4
          %v1058 = vadd.f32 %v1056, %v1057
          %v1059 = vrot.slane %v1058, 2
          %v1060 = vadd.f32 %v1058, %v1059
          %v1061 = vrot.slane %v1060, 1
          %v1062 = vadd.f32 %v1060, %v1061
          %v1063 = vadd.f32 %v1041, %v1062
          %1064 = vst [vmem:[#allocation4] sm:$0x1] %v1063
        $region76: #{tpu_custom_call.1} parent=43 // pred_fallthru
          _
        // Predicated region
        $region77: #{tpu_custom_call.1} parent=43 // pred_check
          _
        $region78: #{tpu_custom_call.1} parent=43 // pred_check_branch
          %1066 = sbr.rel (%p362) target = $region80
        $region79: #{tpu_custom_call.1} parent=43 // pred_region
          %v1067 = vld [vmem:[#allocation3] sm:$0x1]
          %v1068 = vpack.c.bf16 %v1067, %v1067
          %v1069 = vld [vmem:[#allocation11] sm:$0xf]
          %v1070 = vld [vmem:[#allocation11 + $0x4] sm:$0xf]
          %v1071 = vld [vmem:[#allocation11 + $0x8] sm:$0xf]
          %v1072 = vld [vmem:[#allocation11 + $0xc] sm:$0xf]
          %v1073 = vld [vmem:[#allocation11 + $0x10] sm:$0xf]
          %v1074 = vld [vmem:[#allocation11 + $0x14] sm:$0xf]
          %v1075 = vld [vmem:[#allocation11 + $0x18] sm:$0xf]
          %v1076 = vld [vmem:[#allocation11 + $0x1c] sm:$0xf]
          %v1077 = vld [vmem:[#allocation11 + $0x20] sm:$0xf]
          %v1078 = vld [vmem:[#allocation11 + $0x24] sm:$0xf]
          %v1079 = vld [vmem:[#allocation11 + $0x28] sm:$0xf]
          %v1080 = vld [vmem:[#allocation11 + $0x2c] sm:$0xf]
          %v1081 = vld [vmem:[#allocation11 + $0x30] sm:$0xf]
          %v1082 = vld [vmem:[#allocation11 + $0x34] sm:$0xf]
          %v1083 = vld [vmem:[#allocation11 + $0x38] sm:$0xf]
          %v1084 = vld [vmem:[#allocation11 + $0x3c] sm:$0xf]
          %v1085 = vld [vmem:[#allocation4] sm:$0x1]
          %v1086 = vmul.f32 %v1085, 0.0625
          %v1087 = vpack.c.bf16 %v1086, %v1086
          %v1088 = vld [vmem:[#allocation12] sm:$0xf]
          %v1089 = vld [vmem:[#allocation12 + $0x4] sm:$0xf]
          %v1090 = vld [vmem:[#allocation12 + $0x8] sm:$0xf]
          %v1091 = vld [vmem:[#allocation12 + $0xc] sm:$0xf]
          %v1092 = vld [vmem:[#allocation12 + $0x10] sm:$0xf]
          %v1093 = vld [vmem:[#allocation12 + $0x14] sm:$0xf]
          %v1094 = vld [vmem:[#allocation12 + $0x18] sm:$0xf]
          %v1095 = vld [vmem:[#allocation12 + $0x1c] sm:$0xf]
          %v1096 = vld [vmem:[#allocation12 + $0x20] sm:$0xf]
          %v1097 = vld [vmem:[#allocation12 + $0x24] sm:$0xf]
          %v1098 = vld [vmem:[#allocation12 + $0x28] sm:$0xf]
          %v1099 = vld [vmem:[#allocation12 + $0x2c] sm:$0xf]
          %v1100 = vld [vmem:[#allocation12 + $0x30] sm:$0xf]
          %v1101 = vld [vmem:[#allocation12 + $0x34] sm:$0xf]
          %v1102 = vld [vmem:[#allocation12 + $0x38] sm:$0xf]
          %v1103 = vld [vmem:[#allocation12 + $0x3c] sm:$0xf]
          %v1120 = vunpack.c.l.b16 %v1088
          %v1121 = vunpack.c.l.b16 %v1089
          %v1122 = vunpack.c.l.b16 %v1090
          %v1123 = vunpack.c.l.b16 %v1091
          %v1124 = vunpack.c.l.b16 %v1092
          %v1125 = vunpack.c.l.b16 %v1093
          %v1126 = vunpack.c.l.b16 %v1094
          %v1127 = vunpack.c.l.b16 %v1095
          %v1128 = vunpack.c.l.b16 %v1096
          %v1129 = vunpack.c.l.b16 %v1097
          %v1130 = vunpack.c.l.b16 %v1098
          %v1131 = vunpack.c.l.b16 %v1099
          %v1132 = vunpack.c.l.b16 %v1100
          %v1133 = vunpack.c.l.b16 %v1101
          %v1134 = vunpack.c.l.b16 %v1102
          %v1135 = vunpack.c.l.b16 %v1103
          %v1136 = vpack.c.b16 %v1121, %v1120
          %v1137 = vpack.c.b16 %v1123, %v1122
          %v1138 = vpack.c.b16 %v1125, %v1124
          %v1139 = vpack.c.b16 %v1127, %v1126
          %v1140 = vpack.c.b16 %v1129, %v1128
          %v1141 = vpack.c.b16 %v1131, %v1130
          %v1142 = vpack.c.b16 %v1133, %v1132
          %v1143 = vpack.c.b16 %v1135, %v1134
          %1152 = vmatprep.subr.bf16.mxu0 0
          %1153 = vmatpush1.bf16.msra.mxu0 %v1143
          %1154 = vmatprep.subr.bf16.mxu0 0
          %1155 = vmatpush1.bf16.msra.mxu0 %v1142
          %1156 = vmatprep.subr.bf16.mxu0 0
          %1157 = vmatpush1.bf16.msra.mxu0 %v1141
          %1158 = vmatprep.subr.bf16.mxu0 0
          %1159 = vmatpush1.bf16.msra.mxu0 %v1140
          %1160 = vmatprep.subr.bf16.mxu0 0
          %1161 = vmatpush1.bf16.msra.mxu0 %v1139
          %1162 = vmatprep.subr.bf16.mxu0 0
          %1163 = vmatpush1.bf16.msra.mxu0 %v1138
          %1164 = vmatprep.subr.bf16.mxu0 0
          %1165 = vmatpush1.bf16.msra.mxu0 %v1137
          %1166 = vmatprep.subr.bf16.mxu0 0
          %1167 = vmatpush1.bf16.msra.mxu0 %v1136
          %1168 = vmatprep.subr.bf16.mxu0 0
          %1169 = vmatpush2.bf16.msra.mxu0 0
          %1170 = vmatprep.subr.bf16.mxu0 0
          %1171 = vmatpush2.bf16.msra.mxu0 0
          %1172 = vmatprep.subr.bf16.mxu0 0
          %1173 = vmatpush2.bf16.msra.mxu0 0
          %1174 = vmatprep.subr.bf16.mxu0 0
          %1175 = vmatpush2.bf16.msra.mxu0 0
          %1176 = vmatprep.subr.bf16.mxu0 0
          %1177 = vmatpush2.bf16.msra.mxu0 0
          %1178 = vmatprep.subr.bf16.mxu0 0
          %1179 = vmatpush2.bf16.msra.mxu0 0
          %1180 = vmatprep.subr.bf16.mxu0 0
          %1181 = vmatpush2.bf16.msra.mxu0 0
          %1182 = vmatprep.subr.bf16.mxu0 0
          %1183 = vmatpush2.bf16.msra.mxu0 0
          %1184 = vmatprep.mubr.bf16.mxu0 0
          %1185 = vmatmul.mubr.bf16.gmra.mxu0 %v1087
          %v1186 = vpop.f32.mrf.mxu0
          %v1187 = vadd.f32 0.0, %v1186
          %v1188 = vpop.f32.mrf.mxu0
          %v1189 = vpop.f32.mrf.mxu0
          %v1190 = vpop.f32.mrf.mxu0
          %1191 = vdwg.mxu0
          %v1208 = vunpack.c.l.b16 %v1069
          %v1209 = vunpack.c.l.b16 %v1070
          %v1210 = vunpack.c.l.b16 %v1071
          %v1211 = vunpack.c.l.b16 %v1072
          %v1212 = vunpack.c.l.b16 %v1073
          %v1213 = vunpack.c.l.b16 %v1074
          %v1214 = vunpack.c.l.b16 %v1075
          %v1215 = vunpack.c.l.b16 %v1076
          %v1216 = vunpack.c.l.b16 %v1077
          %v1217 = vunpack.c.l.b16 %v1078
          %v1218 = vunpack.c.l.b16 %v1079
          %v1219 = vunpack.c.l.b16 %v1080
          %v1220 = vunpack.c.l.b16 %v1081
          %v1221 = vunpack.c.l.b16 %v1082
          %v1222 = vunpack.c.l.b16 %v1083
          %v1223 = vunpack.c.l.b16 %v1084
          %v1224 = vpack.c.b16 %v1209, %v1208
          %v1225 = vpack.c.b16 %v1211, %v1210
          %v1226 = vpack.c.b16 %v1213, %v1212
          %v1227 = vpack.c.b16 %v1215, %v1214
          %v1228 = vpack.c.b16 %v1217, %v1216
          %v1229 = vpack.c.b16 %v1219, %v1218
          %v1230 = vpack.c.b16 %v1221, %v1220
          %v1231 = vpack.c.b16 %v1223, %v1222
          %1240 = vmatprep.subr.bf16.mxu0 0
          %1241 = vmatpush1.bf16.msra.mxu0 %v1231
          %1242 = vmatprep.subr.bf16.mxu0 0
          %1243 = vmatpush1.bf16.msra.mxu0 %v1230
          %1244 = vmatprep.subr.bf16.mxu0 0
          %1245 = vmatpush1.bf16.msra.mxu0 %v1229
          %1246 = vmatprep.subr.bf16.mxu0 0
          %1247 = vmatpush1.bf16.msra.mxu0 %v1228
          %1248 = vmatprep.subr.bf16.mxu0 0
          %1249 = vmatpush1.bf16.msra.mxu0 %v1227
          %1250 = vmatprep.subr.bf16.mxu0 0
          %1251 = vmatpush1.bf16.msra.mxu0 %v1226
          %1252 = vmatprep.subr.bf16.mxu0 0
          %1253 = vmatpush1.bf16.msra.mxu0 %v1225
          %1254 = vmatprep.subr.bf16.mxu0 0
          %1255 = vmatpush1.bf16.msra.mxu0 %v1224
          %1256 = vmatprep.subr.bf16.mxu0 0
          %1257 = vmatpush2.bf16.msra.mxu0 0
          %1258 = vmatprep.subr.bf16.mxu0 0
          %1259 = vmatpush2.bf16.msra.mxu0 0
          %1260 = vmatprep.subr.bf16.mxu0 0
          %1261 = vmatpush2.bf16.msra.mxu0 0
          %1262 = vmatprep.subr.bf16.mxu0 0
          %1263 = vmatpush2.bf16.msra.mxu0 0
          %1264 = vmatprep.subr.bf16.mxu0 0
          %1265 = vmatpush2.bf16.msra.mxu0 0
          %1266 = vmatprep.subr.bf16.mxu0 0
          %1267 = vmatpush2.bf16.msra.mxu0 0
          %1268 = vmatprep.subr.bf16.mxu0 0
          %1269 = vmatpush2.bf16.msra.mxu0 0
          %1270 = vmatprep.subr.bf16.mxu0 0
          %1271 = vmatpush2.bf16.msra.mxu0 0
          %1272 = vmatprep.mubr.bf16.mxu0 0
          %1273 = vmatmul.mubr.bf16.gmra.mxu0 %v1068
          %v1274 = vpop.f32.mrf.mxu0
          %v1275 = vadd.f32 %v1187, %v1274
          %v1276 = vpop.f32.mrf.mxu0
          %v1277 = vpop.f32.mrf.mxu0
          %v1278 = vpop.f32.mrf.mxu0
          %1279 = vdwg.mxu0
          %v1280 = vld [vmem:[%s6] sm:$0x1]
          %v1281 = vadd.f32 %v1275, %v1280
          %1282 = vst [vmem:[#allocation14] sm:$0x1] %v1281
        $region80: #{tpu_custom_call.1} parent=43 // pred_fallthru
          _
        // Predicated region
        $region81: #{tpu_custom_call.1} parent=43 // pred_check
          %p1283 = pneg %p190
        $region82: #{tpu_custom_call.1} parent=43 // pred_check_branch
          %1285 = sbr.rel (%p1283) target = $region84
        $region83: #{tpu_custom_call.1} parent=43 // pred_region
          %s1287 = ssub.s32 16, 16
          %1288 = vsyncadd [#allocation8], %s1287
          %s1290 = sshll.u32 [#allocation14], 4
          %s1291 = int_to_ptr.vmem [resolvable:$true] %s1290
          %1293 = dma.vmem_to_hbm [thread:$0]  %s1291, 16, %s7, [#allocation8]
        $region84: #{tpu_custom_call.1} parent=43 // pred_fallthru
          _
        // Predicated region
        $region85: #{tpu_custom_call.1} parent=43 // pred_check
          %p1294 = pneg %p190
        $region86: #{tpu_custom_call.1} parent=43 // pred_check_branch
          %1296 = sbr.rel (%p1294) target = $region88
        $region87: #{tpu_custom_call.1} parent=43 // pred_region
          %1297 = dma.done [#allocation8], 16
        $region88: #{tpu_custom_call.1} parent=43 // pred_fallthru
          _
      $region44: #{tpu_custom_call.1} parent=5 // pred_fallthru
        _
      %p1298 = scmp.le.s32.totalorder 2, %s19
      // Predicated region
      $region89: #{tpu_custom_call.1} parent=5 // pred_check
        %p1299 = pneg %p1298
      $region90: #{tpu_custom_call.1} parent=5 // pred_check_branch
        %1301 = sbr.rel (%p1299) target = $region92
      $region91: #{tpu_custom_call.1} parent=5 // pred_region
        %s1302 = ssub.s32 %s19, 2
      $region92: #{tpu_custom_call.1} parent=5 // pred_fallthru
        _
    $region6: #{tpu_custom_call.1} parent=1 // loop_footer
      %s23 = sadd.s32 1, %s19
    $region7: #{tpu_custom_call.1} parent=1 // loop_footer_branch
      %18 = sbr.rel target = $region3
    $region8: #{tpu_custom_call.1} parent=1 // loop_exit
      _
    %1303 = vsyncpa [#allocation7], 1
    %s1304 = scalar_lea.sflag [#allocation7], 1
    %1305 = vsyncpa %s1304, 1
    %1306 = vsyncpa [#allocation10], 1
    %s1307 = scalar_lea.sflag [#allocation10], 1
    %1308 = vsyncpa %s1307, 1
    %1309 = vsyncpa [#allocation13], 1
    %1310 = vsyncpa [#allocation8], 1
    %s1311 = scalar_lea.sflag [#allocation8], 1
    %1312 = vsyncpa %s1311, 1
  %1313 = vsyncmov [#allocation5]
  %s1314 = vpop.sfrf %1313
  %p1315 = scmp.eq.s32.totalorder %s1314, 0
  %p1316 = pneg %p1315
  %1318 = shalt.err (%p1316)

</llo_original>
